<compile_context>
chip_gen: v6e
topology: v6e:2x2x1
jax: 0.10.0
libtpu: 0.0.40
codegen_flags: <defaults>
</compile_context>

<pallas_src>
import functools

import jax
import jax.numpy as jnp
from jax.experimental import pallas as pl
from jax.experimental.pallas import tpu as pltpu

EMBED_DIM = 100    # self.embeddingDim
HIDDEN_DIM = 20    # self.hiddenDim
HIDDEN_PAD = 32    # pad H=20 -> 32 so 4*Hp = 128 (one vreg lane width)
NUM_LAYERS = 1     # self.numLayers


def _round_up(x, m):
    return (x + m - 1) // m * m


# --------------------------------------------------------------------------- #
# Kernel
# --------------------------------------------------------------------------- #
def bilstm_classifier_kernel(pre_ref,            # (T, Bblk, 8*Hp) gate pre-activations (bias folded in)
                             whh_f_ref,          # (Hp, 4*Hp)
                             whh_b_ref,          # (Hp, 4*Hp)
                             wc_ref,             # (2*Hp, 1)
                             bc_ref,             # (1, 1)
                             out_ref):           # (Bblk, 1)
    T, Bblk, _ = pre_ref.shape
    Hp = whh_f_ref.shape[0]
    G = 4 * Hp                                   # = 128: one direction's gate width

    # Hoist weight loads out of the recurrence.
    whh_f = whh_f_ref[...]
    whh_b = whh_b_ref[...]

    def cell(pre_gates, h, c, whh):
        # PyTorch gate ordering: i, f, g, o (each Hp wide, true values in first H cols)
        gates = pre_gates + jnp.dot(h, whh, preferred_element_type=jnp.float32)
        i = jax.nn.sigmoid(gates[:, 0 * Hp:1 * Hp])
        f = jax.nn.sigmoid(gates[:, 1 * Hp:2 * Hp])
        g = jnp.tanh(gates[:, 2 * Hp:3 * Hp])
        o = jax.nn.sigmoid(gates[:, 3 * Hp:4 * Hp])
        c_new = f * c + i * g
        h_new = o * jnp.tanh(c_new)
        return h_new, c_new

    def body(t, carry):
        h_f, c_f, h_b, c_b = carry
        x_fwd = pre_ref[t]               # (Bblk, 8*Hp): [:, :G] is forward pre-gates
        x_bwd = pre_ref[T - 1 - t]       # (Bblk, 8*Hp): [:, G:] is backward pre-gates
        h_f, c_f = cell(x_fwd[:, :G], h_f, c_f, whh_f)
        h_b, c_b = cell(x_bwd[:, G:], h_b, c_b, whh_b)
        return (h_f, c_f, h_b, c_b)

    zeros = jnp.zeros((Bblk, Hp), jnp.float32)
    unroll = True if T <= 32 else 8
    h_f, c_f, h_b, c_b = jax.lax.fori_loop(
        0, T, body, (zeros, zeros, zeros, zeros), unroll=unroll)

    # hidden.transpose(0,1).reshape(B,-1) == concat([h_fwd_final, h_bwd_final], -1)
    hidden = jnp.concatenate([h_f, h_b], axis=-1)            # (Bblk, 2*Hp)
    out_ref[...] = (jnp.dot(hidden, wc_ref[...], preferred_element_type=jnp.float32)
                    + bc_ref[...])                           # (Bblk, 1)


# --------------------------------------------------------------------------- #
# Wrapper / glue
# --------------------------------------------------------------------------- #
def _pad_gate_cols(w, h, hp):
    """(rows, 4*h) -> (rows, 4*hp); each gate block zero-padded from h to hp cols."""
    rows = w.shape[0]
    w4 = w.reshape(rows, 4, h)
    w4 = jnp.pad(w4, ((0, 0), (0, 0), (0, hp - h)))
    return w4.reshape(rows, 4 * hp)


def _prepare_kernel_params(params):
    H, Hp = HIDDEN_DIM, HIDDEN_PAD

    wih_f = _pad_gate_cols(params["wih_f"], H, Hp)                          # (E, 4Hp)
    wih_b = _pad_gate_cols(params["wih_b"], H, Hp)
    b_f = _pad_gate_cols(params["b_f"], H, Hp)                              # (1, 4Hp)
    b_b = _pad_gate_cols(params["b_b"], H, Hp)
    whh_f = jnp.pad(_pad_gate_cols(params["whh_f"], H, Hp), ((0, Hp - H), (0, 0)))  # (Hp, 4Hp)
    whh_b = jnp.pad(_pad_gate_cols(params["whh_b"], H, Hp), ((0, Hp - H), (0, 0)))

    wc = params["wc"]                                                       # (2H, 1)
    wc_pad = jnp.zeros((2 * Hp, 1), jnp.float32)
    wc_pad = wc_pad.at[:H].set(wc[:H]).at[Hp:Hp + H].set(wc[H:])

    # Pre-project the embedding table once (big MXU-friendly matmul, done by XLA
    # in the wrapper) and fold the combined b_ih+b_hh biases in.  The padding_idx
    # row (zero embedding) projects to exactly the bias, matching PyTorch.
    wih_cat = jnp.concatenate([wih_f, wih_b], axis=1)                       # (E, 8Hp)
    b_cat = jnp.concatenate([b_f, b_b], axis=1)                             # (1, 8Hp)
    table_proj = (params["embedding"].astype(jnp.float32) @ wih_cat + b_cat)  # (vocab, 8Hp)
    return table_proj, whh_f, whh_b, wc_pad, params["bc"]


def _choose_bblk(B, T, gate_width):
    # Double-buffered f32 time-major input tile must fit comfortably in scoped VMEM
    # on every generation (v7x: 64 MiB physical, v5e: 16 MiB default scoped).
    input_budget = 24 * 1024 * 1024
    bytes_per_row = 2 * T * gate_width * 4          # 2 pipeline buffers, f32
    max_rows = max(8, input_budget // bytes_per_row)
    bblk = min(256, max_rows, _round_up(B, 8))
    bblk = max(8, (bblk // 8) * 8)
    return bblk


def message_history_rnn_forward(x_ids, params):
    table_proj, whh_f, whh_b, wc_pad, bc = _prepare_kernel_params(params)
    Hp = HIDDEN_PAD
    G = 4 * Hp                                      # 128
    B, T = x_ids.shape

    bblk = _choose_bblk(B, T, 2 * G)
    B_pad = _round_up(B, bblk)
    ids = x_ids if B_pad == B else jnp.pad(x_ids, ((0, B_pad - B), (0, 0)))

    # Gather pre-projected gate activations directly time-major (T, B_pad, 8Hp);
    # never materializes the (B, T, E) f32 embedding or a separate transpose pass.
    pre_tm = jnp.take(table_proj, ids.T, axis=0)

    grid = (B_pad // bblk,)
    out = pl.pallas_call(
        bilstm_classifier_kernel,
        out_shape=jax.ShapeDtypeStruct((B_pad, 1), jnp.float32),
        grid_spec=pltpu.PrefetchScalarGridSpec(
            num_scalar_prefetch=0,
            grid=grid,
            in_specs=[
                pl.BlockSpec((T, bblk, 2 * G), lambda b: (0, b, 0)),   # pipelined per batch tile
                pl.BlockSpec((Hp, G), lambda b: (0, 0)),               # weights: constant block
                pl.BlockSpec((Hp, G), lambda b: (0, 0)),
                pl.BlockSpec((2 * Hp, 1), lambda b: (0, 0)),
                pl.BlockSpec((1, 1), lambda b: (0, 0)),
            ],
            out_specs=pl.BlockSpec((bblk, 1), lambda b: (b, 0)),
        ),
        compiler_params=pltpu.CompilerParams(
            dimension_semantics=("parallel",),      # batch tiles are independent (megacore on v7x)
            vmem_limit_bytes=48 * 1024 * 1024,
        ),
    )(pre_tm, whh_f, whh_b, wc_pad, bc)
    return out[:B, 0]                               # logits.reshape(-1)


# --------------------------------------------------------------------------- #
# Params / reference
# --------------------------------------------------------------------------- #
def init_params(key, vocab_len, pad_idx):
    H, E = HIDDEN_DIM, EMBED_DIM
    ks = jax.random.split(key, 10)
    scale = 1.0 / jnp.sqrt(jnp.float32(H))

    def u(k, shape):
        return jax.random.uniform(k, shape, jnp.float32, -scale, scale)

    embedding = jax.random.normal(ks[0], (vocab_len, E), jnp.float32)
    embedding = embedding.at[pad_idx].set(0.0)      # padding_idx row is zero

    return {
        "embedding": embedding,
        # forward direction (weights stored transposed: (in, 4H), gate order i,f,g,o)
        "wih_f": u(ks[1], (E, 4 * H)),
        "whh_f": u(ks[2], (H, 4 * H)),
        "b_f":   u(ks[3], (1, 4 * H)),              # b_ih + b_hh combined
        # backward direction
        "wih_b": u(ks[4], (E, 4 * H)),
        "whh_b": u(ks[5], (H, 4 * H)),
        "b_b":   u(ks[6], (1, 4 * H)),
        # classifier: Linear(2*H*num_layers, 1)
        "wc": u(ks[7], (2 * H * NUM_LAYERS, 1)),
        "bc": u(ks[8], (1, 1)),
    }


def reference_forward(x_ids, params):
    # Pure-JAX reference of the PyTorch forward semantics (unpadded, un-fused).
    emb = params["embedding"][x_ids]
    B, T, _ = emb.shape
    H = HIDDEN_DIM

    def cell(x_t, h, c, wih, whh, b):
        g = x_t @ wih + h @ whh + b
        i = jax.nn.sigmoid(g[:, :H])
        f = jax.nn.sigmoid(g[:, H:2 * H])
        gg = jnp.tanh(g[:, 2 * H:3 * H])
        o = jax.nn.sigmoid(g[:, 3 * H:])
        c = f * c + i * gg
        h = o * jnp.tanh(c)
        return h, c

    hf = cf = hb = cb = jnp.zeros((B, H), jnp.float32)
    for t in range(T):
        hf, cf = cell(emb[:, t], hf, cf, params["wih_f"], params["whh_f"], params["b_f"])
        hb, cb = cell(emb[:, T - 1 - t], hb, cb, params["wih_b"], params["whh_b"], params["b_b"])
    hidden = jnp.concatenate([hf, hb], axis=-1)
    return (hidden @ params["wc"] + params["bc"]).reshape(-1)


if __name__ == "__main__":
    VOCAB_LEN = 50
    PAD_IDX = 0
    B, T = 2, 8

    key = jax.random.PRNGKey(0)
    k_param, k_data = jax.random.split(key)
    params = init_params(k_param, VOCAB_LEN, PAD_IDX)
    x = jax.random.randint(k_data, (B, T), 0, VOCAB_LEN, dtype=jnp.int32)

    fwd = jax.jit(message_history_rnn_forward)
    logits = jax.block_until_ready(fwd(x, params))
    ref = jax.block_until_ready(reference_forward(x, params))

    assert logits.shape == (B,)
    assert jnp.allclose(logits, ref, atol=1e-4, rtol=1e-4), (logits, ref)
    print("KERNEL_OK")
</pallas_src>

<mosaic_0001>
module attributes {stable_mosaic.version = 11 : i64} {
  func.func @bilstm_classifier_kernel(%arg0: i32, %arg1: memref<8x8x256xf32, #tpu.memory_space<vmem>>, %arg2: memref<32x128xf32, #tpu.memory_space<vmem>>, %arg3: memref<32x128xf32, #tpu.memory_space<vmem>>, %arg4: memref<64x1xf32, #tpu.memory_space<vmem>>, %arg5: memref<1x1xf32, #tpu.memory_space<vmem>>, %arg6: memref<8x1xf32, #tpu.memory_space<vmem>>) attributes {dimension_semantics = [#tpu.dimension_semantics<parallel>], iteration_bounds = array<i64: 1>, scalar_prefetch = 0 : i64, scratch_operands = 0 : i64, tpu.core_type = #tpu.core_type<tc>, window_params = [{transform_indices = @transform_0, window_bounds = array<i64: 8, 8, 256>}, {pipeline_mode = #tpu.pipeline_mode<synchronous>, transform_indices = @transform_1, window_bounds = array<i64: 32, 128>}, {pipeline_mode = #tpu.pipeline_mode<synchronous>, transform_indices = @transform_2, window_bounds = array<i64: 32, 128>}, {pipeline_mode = #tpu.pipeline_mode<synchronous>, transform_indices = @transform_3, window_bounds = array<i64: 64, 1>}, {pipeline_mode = #tpu.pipeline_mode<synchronous>, transform_indices = @transform_4, window_bounds = array<i64: 1, 1>}, {transform_indices = @transform_5, window_bounds = array<i64: 8, 1>}]} {
    %c0 = arith.constant 0 : index
    %c0_0 = arith.constant 0 : index
    %0 = vector.load %arg2[%c0, %c0_0] : memref<32x128xf32, #tpu.memory_space<vmem>>, vector<32x128xf32>
    %c0_1 = arith.constant 0 : index
    %c0_2 = arith.constant 0 : index
    %1 = vector.load %arg3[%c0_1, %c0_2] : memref<32x128xf32, #tpu.memory_space<vmem>>, vector<32x128xf32>
    %cst = arith.constant 0.000000e+00 : f32
    %2 = vector.broadcast %cst : f32 to vector<8x32xf32>
    %c0_i32 = arith.constant 0 : i32
    %3 = arith.index_cast %c0_i32 : i32 to index
    %c0_3 = arith.constant 0 : index
    %c0_4 = arith.constant 0 : index
    %4 = vector.load %arg1[%3, %c0_3, %c0_4] : memref<8x8x256xf32, #tpu.memory_space<vmem>>, vector<1x8x256xf32>
    %5 = vector.shape_cast %4 : vector<1x8x256xf32> to vector<8x256xf32>
    %c7_i32 = arith.constant 7 : i32
    %6 = arith.subi %c7_i32, %c0_i32 : i32
    %7 = arith.index_cast %6 : i32 to index
    %c0_5 = arith.constant 0 : index
    %c0_6 = arith.constant 0 : index
    %8 = vector.load %arg1[%7, %c0_5, %c0_6] : memref<8x8x256xf32, #tpu.memory_space<vmem>>, vector<1x8x256xf32>
    %9 = vector.shape_cast %8 : vector<1x8x256xf32> to vector<8x256xf32>
    %10 = vector.extract_strided_slice %5 {offsets = [0, 0], sizes = [8, 128], strides = [1, 1]} : vector<8x256xf32> to vector<8x128xf32>
    %cst_7 = arith.constant dense<0.000000e+00> : vector<8x128xf32>
    %11 = tpu.matmul %2, %0, %cst_7 {dimension_numbers = #tpu.dot_dimension_numbers<[1], [0], [0], [1], [0, 0, 1, 1], [], []>} : vector<8x32xf32>, vector<32x128xf32>, vector<8x128xf32> -> vector<8x128xf32>
    %12 = arith.addf %10, %11 : vector<8x128xf32>
    %13 = vector.extract_strided_slice %12 {offsets = [0, 0], sizes = [8, 32], strides = [1, 1]} : vector<8x128xf32> to vector<8x32xf32>
    %14 = arith.negf %13 : vector<8x32xf32>
    %15 = math.exp %14 : vector<8x32xf32>
    %cst_8 = arith.constant 1.000000e+00 : f32
    %16 = vector.broadcast %cst_8 : f32 to vector<8x32xf32>
    %17 = arith.addf %16, %15 : vector<8x32xf32>
    %18 = arith.divf %16, %17 : vector<8x32xf32>
    %19 = vector.extract_strided_slice %12 {offsets = [0, 32], sizes = [8, 32], strides = [1, 1]} : vector<8x128xf32> to vector<8x32xf32>
    %20 = arith.negf %19 : vector<8x32xf32>
    %21 = math.exp %20 : vector<8x32xf32>
    %cst_9 = arith.constant 1.000000e+00 : f32
    %22 = vector.broadcast %cst_9 : f32 to vector<8x32xf32>
    %23 = arith.addf %22, %21 : vector<8x32xf32>
    %24 = arith.divf %22, %23 : vector<8x32xf32>
    %25 = vector.extract_strided_slice %12 {offsets = [0, 64], sizes = [8, 32], strides = [1, 1]} : vector<8x128xf32> to vector<8x32xf32>
    %26 = math.tanh %25 : vector<8x32xf32>
    %27 = vector.extract_strided_slice %12 {offsets = [0, 96], sizes = [8, 32], strides = [1, 1]} : vector<8x128xf32> to vector<8x32xf32>
    %28 = arith.negf %27 : vector<8x32xf32>
    %29 = math.exp %28 : vector<8x32xf32>
    %cst_10 = arith.constant 1.000000e+00 : f32
    %30 = vector.broadcast %cst_10 : f32 to vector<8x32xf32>
    %31 = arith.addf %30, %29 : vector<8x32xf32>
    %32 = arith.divf %30, %31 : vector<8x32xf32>
    %33 = arith.mulf %24, %2 : vector<8x32xf32>
    %34 = arith.mulf %18, %26 : vector<8x32xf32>
    %35 = arith.addf %33, %34 : vector<8x32xf32>
    %36 = math.tanh %35 : vector<8x32xf32>
    %37 = arith.mulf %32, %36 : vector<8x32xf32>
    %38 = vector.extract_strided_slice %9 {offsets = [0, 128], sizes = [8, 128], strides = [1, 1]} : vector<8x256xf32> to vector<8x128xf32>
    %cst_11 = arith.constant dense<0.000000e+00> : vector<8x128xf32>
    %39 = tpu.matmul %2, %1, %cst_11 {dimension_numbers = #tpu.dot_dimension_numbers<[1], [0], [0], [1], [0, 0, 1, 1], [], []>} : vector<8x32xf32>, vector<32x128xf32>, vector<8x128xf32> -> vector<8x128xf32>
    %40 = arith.addf %38, %39 : vector<8x128xf32>
    %41 = vector.extract_strided_slice %40 {offsets = [0, 0], sizes = [8, 32], strides = [1, 1]} : vector<8x128xf32> to vector<8x32xf32>
    %42 = arith.negf %41 : vector<8x32xf32>
    %43 = math.exp %42 : vector<8x32xf32>
    %cst_12 = arith.constant 1.000000e+00 : f32
    %44 = vector.broadcast %cst_12 : f32 to vector<8x32xf32>
    %45 = arith.addf %44, %43 : vector<8x32xf32>
    %46 = arith.divf %44, %45 : vector<8x32xf32>
    %47 = vector.extract_strided_slice %40 {offsets = [0, 32], sizes = [8, 32], strides = [1, 1]} : vector<8x128xf32> to vector<8x32xf32>
    %48 = arith.negf %47 : vector<8x32xf32>
    %49 = math.exp %48 : vector<8x32xf32>
    %cst_13 = arith.constant 1.000000e+00 : f32
    %50 = vector.broadcast %cst_13 : f32 to vector<8x32xf32>
    %51 = arith.addf %50, %49 : vector<8x32xf32>
    %52 = arith.divf %50, %51 : vector<8x32xf32>
    %53 = vector.extract_strided_slice %40 {offsets = [0, 64], sizes = [8, 32], strides = [1, 1]} : vector<8x128xf32> to vector<8x32xf32>
    %54 = math.tanh %53 : vector<8x32xf32>
    %55 = vector.extract_strided_slice %40 {offsets = [0, 96], sizes = [8, 32], strides = [1, 1]} : vector<8x128xf32> to vector<8x32xf32>
    %56 = arith.negf %55 : vector<8x32xf32>
    %57 = math.exp %56 : vector<8x32xf32>
    %cst_14 = arith.constant 1.000000e+00 : f32
    %58 = vector.broadcast %cst_14 : f32 to vector<8x32xf32>
    %59 = arith.addf %58, %57 : vector<8x32xf32>
    %60 = arith.divf %58, %59 : vector<8x32xf32>
    %61 = arith.mulf %52, %2 : vector<8x32xf32>
    %62 = arith.mulf %46, %54 : vector<8x32xf32>
    %63 = arith.addf %61, %62 : vector<8x32xf32>
    %64 = math.tanh %63 : vector<8x32xf32>
    %65 = arith.mulf %60, %64 : vector<8x32xf32>
    %c1_i32 = arith.constant 1 : i32
    %66 = arith.index_cast %c1_i32 : i32 to index
    %c0_15 = arith.constant 0 : index
    %c0_16 = arith.constant 0 : index
    %67 = vector.load %arg1[%66, %c0_15, %c0_16] : memref<8x8x256xf32, #tpu.memory_space<vmem>>, vector<1x8x256xf32>
    %68 = vector.shape_cast %67 : vector<1x8x256xf32> to vector<8x256xf32>
    %c7_i32_17 = arith.constant 7 : i32
    %69 = arith.subi %c7_i32_17, %c1_i32 : i32
    %70 = arith.index_cast %69 : i32 to index
    %c0_18 = arith.constant 0 : index
    %c0_19 = arith.constant 0 : index
    %71 = vector.load %arg1[%70, %c0_18, %c0_19] : memref<8x8x256xf32, #tpu.memory_space<vmem>>, vector<1x8x256xf32>
    %72 = vector.shape_cast %71 : vector<1x8x256xf32> to vector<8x256xf32>
    %73 = vector.extract_strided_slice %68 {offsets = [0, 0], sizes = [8, 128], strides = [1, 1]} : vector<8x256xf32> to vector<8x128xf32>
    %cst_20 = arith.constant dense<0.000000e+00> : vector<8x128xf32>
    %74 = tpu.matmul %37, %0, %cst_20 {dimension_numbers = #tpu.dot_dimension_numbers<[1], [0], [0], [1], [0, 0, 1, 1], [], []>} : vector<8x32xf32>, vector<32x128xf32>, vector<8x128xf32> -> vector<8x128xf32>
    %75 = arith.addf %73, %74 : vector<8x128xf32>
    %76 = vector.extract_strided_slice %75 {offsets = [0, 0], sizes = [8, 32], strides = [1, 1]} : vector<8x128xf32> to vector<8x32xf32>
    %77 = arith.negf %76 : vector<8x32xf32>
    %78 = math.exp %77 : vector<8x32xf32>
    %cst_21 = arith.constant 1.000000e+00 : f32
    %79 = vector.broadcast %cst_21 : f32 to vector<8x32xf32>
    %80 = arith.addf %79, %78 : vector<8x32xf32>
    %81 = arith.divf %79, %80 : vector<8x32xf32>
    %82 = vector.extract_strided_slice %75 {offsets = [0, 32], sizes = [8, 32], strides = [1, 1]} : vector<8x128xf32> to vector<8x32xf32>
    %83 = arith.negf %82 : vector<8x32xf32>
    %84 = math.exp %83 : vector<8x32xf32>
    %cst_22 = arith.constant 1.000000e+00 : f32
    %85 = vector.broadcast %cst_22 : f32 to vector<8x32xf32>
    %86 = arith.addf %85, %84 : vector<8x32xf32>
    %87 = arith.divf %85, %86 : vector<8x32xf32>
    %88 = vector.extract_strided_slice %75 {offsets = [0, 64], sizes = [8, 32], strides = [1, 1]} : vector<8x128xf32> to vector<8x32xf32>
    %89 = math.tanh %88 : vector<8x32xf32>
    %90 = vector.extract_strided_slice %75 {offsets = [0, 96], sizes = [8, 32], strides = [1, 1]} : vector<8x128xf32> to vector<8x32xf32>
    %91 = arith.negf %90 : vector<8x32xf32>
    %92 = math.exp %91 : vector<8x32xf32>
    %cst_23 = arith.constant 1.000000e+00 : f32
    %93 = vector.broadcast %cst_23 : f32 to vector<8x32xf32>
    %94 = arith.addf %93, %92 : vector<8x32xf32>
    %95 = arith.divf %93, %94 : vector<8x32xf32>
    %96 = arith.mulf %87, %35 : vector<8x32xf32>
    %97 = arith.mulf %81, %89 : vector<8x32xf32>
    %98 = arith.addf %96, %97 : vector<8x32xf32>
    %99 = math.tanh %98 : vector<8x32xf32>
    %100 = arith.mulf %95, %99 : vector<8x32xf32>
    %101 = vector.extract_strided_slice %72 {offsets = [0, 128], sizes = [8, 128], strides = [1, 1]} : vector<8x256xf32> to vector<8x128xf32>
    %cst_24 = arith.constant dense<0.000000e+00> : vector<8x128xf32>
    %102 = tpu.matmul %65, %1, %cst_24 {dimension_numbers = #tpu.dot_dimension_numbers<[1], [0], [0], [1], [0, 0, 1, 1], [], []>} : vector<8x32xf32>, vector<32x128xf32>, vector<8x128xf32> -> vector<8x128xf32>
    %103 = arith.addf %101, %102 : vector<8x128xf32>
    %104 = vector.extract_strided_slice %103 {offsets = [0, 0], sizes = [8, 32], strides = [1, 1]} : vector<8x128xf32> to vector<8x32xf32>
    %105 = arith.negf %104 : vector<8x32xf32>
    %106 = math.exp %105 : vector<8x32xf32>
    %cst_25 = arith.constant 1.000000e+00 : f32
    %107 = vector.broadcast %cst_25 : f32 to vector<8x32xf32>
    %108 = arith.addf %107, %106 : vector<8x32xf32>
    %109 = arith.divf %107, %108 : vector<8x32xf32>
    %110 = vector.extract_strided_slice %103 {offsets = [0, 32], sizes = [8, 32], strides = [1, 1]} : vector<8x128xf32> to vector<8x32xf32>
    %111 = arith.negf %110 : vector<8x32xf32>
    %112 = math.exp %111 : vector<8x32xf32>
    %cst_26 = arith.constant 1.000000e+00 : f32
    %113 = vector.broadcast %cst_26 : f32 to vector<8x32xf32>
    %114 = arith.addf %113, %112 : vector<8x32xf32>
    %115 = arith.divf %113, %114 : vector<8x32xf32>
    %116 = vector.extract_strided_slice %103 {offsets = [0, 64], sizes = [8, 32], strides = [1, 1]} : vector<8x128xf32> to vector<8x32xf32>
    %117 = math.tanh %116 : vector<8x32xf32>
    %118 = vector.extract_strided_slice %103 {offsets = [0, 96], sizes = [8, 32], strides = [1, 1]} : vector<8x128xf32> to vector<8x32xf32>
    %119 = arith.negf %118 : vector<8x32xf32>
    %120 = math.exp %119 : vector<8x32xf32>
    %cst_27 = arith.constant 1.000000e+00 : f32
    %121 = vector.broadcast %cst_27 : f32 to vector<8x32xf32>
    %122 = arith.addf %121, %120 : vector<8x32xf32>
    %123 = arith.divf %121, %122 : vector<8x32xf32>
    %124 = arith.mulf %115, %63 : vector<8x32xf32>
    %125 = arith.mulf %109, %117 : vector<8x32xf32>
    %126 = arith.addf %124, %125 : vector<8x32xf32>
    %127 = math.tanh %126 : vector<8x32xf32>
    %128 = arith.mulf %123, %127 : vector<8x32xf32>
    %c2_i32 = arith.constant 2 : i32
    %129 = arith.index_cast %c2_i32 : i32 to index
    %c0_28 = arith.constant 0 : index
    %c0_29 = arith.constant 0 : index
    %130 = vector.load %arg1[%129, %c0_28, %c0_29] : memref<8x8x256xf32, #tpu.memory_space<vmem>>, vector<1x8x256xf32>
    %131 = vector.shape_cast %130 : vector<1x8x256xf32> to vector<8x256xf32>
    %c7_i32_30 = arith.constant 7 : i32
    %132 = arith.subi %c7_i32_30, %c2_i32 : i32
    %133 = arith.index_cast %132 : i32 to index
    %c0_31 = arith.constant 0 : index
    %c0_32 = arith.constant 0 : index
    %134 = vector.load %arg1[%133, %c0_31, %c0_32] : memref<8x8x256xf32, #tpu.memory_space<vmem>>, vector<1x8x256xf32>
    %135 = vector.shape_cast %134 : vector<1x8x256xf32> to vector<8x256xf32>
    %136 = vector.extract_strided_slice %131 {offsets = [0, 0], sizes = [8, 128], strides = [1, 1]} : vector<8x256xf32> to vector<8x128xf32>
    %cst_33 = arith.constant dense<0.000000e+00> : vector<8x128xf32>
    %137 = tpu.matmul %100, %0, %cst_33 {dimension_numbers = #tpu.dot_dimension_numbers<[1], [0], [0], [1], [0, 0, 1, 1], [], []>} : vector<8x32xf32>, vector<32x128xf32>, vector<8x128xf32> -> vector<8x128xf32>
    %138 = arith.addf %136, %137 : vector<8x128xf32>
    %139 = vector.extract_strided_slice %138 {offsets = [0, 0], sizes = [8, 32], strides = [1, 1]} : vector<8x128xf32> to vector<8x32xf32>
    %140 = arith.negf %139 : vector<8x32xf32>
    %141 = math.exp %140 : vector<8x32xf32>
    %cst_34 = arith.constant 1.000000e+00 : f32
    %142 = vector.broadcast %cst_34 : f32 to vector<8x32xf32>
    %143 = arith.addf %142, %141 : vector<8x32xf32>
    %144 = arith.divf %142, %143 : vector<8x32xf32>
    %145 = vector.extract_strided_slice %138 {offsets = [0, 32], sizes = [8, 32], strides = [1, 1]} : vector<8x128xf32> to vector<8x32xf32>
    %146 = arith.negf %145 : vector<8x32xf32>
    %147 = math.exp %146 : vector<8x32xf32>
    %cst_35 = arith.constant 1.000000e+00 : f32
    %148 = vector.broadcast %cst_35 : f32 to vector<8x32xf32>
    %149 = arith.addf %148, %147 : vector<8x32xf32>
    %150 = arith.divf %148, %149 : vector<8x32xf32>
    %151 = vector.extract_strided_slice %138 {offsets = [0, 64], sizes = [8, 32], strides = [1, 1]} : vector<8x128xf32> to vector<8x32xf32>
    %152 = math.tanh %151 : vector<8x32xf32>
    %153 = vector.extract_strided_slice %138 {offsets = [0, 96], sizes = [8, 32], strides = [1, 1]} : vector<8x128xf32> to vector<8x32xf32>
    %154 = arith.negf %153 : vector<8x32xf32>
    %155 = math.exp %154 : vector<8x32xf32>
    %cst_36 = arith.constant 1.000000e+00 : f32
    %156 = vector.broadcast %cst_36 : f32 to vector<8x32xf32>
    %157 = arith.addf %156, %155 : vector<8x32xf32>
    %158 = arith.divf %156, %157 : vector<8x32xf32>
    %159 = arith.mulf %150, %98 : vector<8x32xf32>
    %160 = arith.mulf %144, %152 : vector<8x32xf32>
    %161 = arith.addf %159, %160 : vector<8x32xf32>
    %162 = math.tanh %161 : vector<8x32xf32>
    %163 = arith.mulf %158, %162 : vector<8x32xf32>
    %164 = vector.extract_strided_slice %135 {offsets = [0, 128], sizes = [8, 128], strides = [1, 1]} : vector<8x256xf32> to vector<8x128xf32>
    %cst_37 = arith.constant dense<0.000000e+00> : vector<8x128xf32>
    %165 = tpu.matmul %128, %1, %cst_37 {dimension_numbers = #tpu.dot_dimension_numbers<[1], [0], [0], [1], [0, 0, 1, 1], [], []>} : vector<8x32xf32>, vector<32x128xf32>, vector<8x128xf32> -> vector<8x128xf32>
    %166 = arith.addf %164, %165 : vector<8x128xf32>
    %167 = vector.extract_strided_slice %166 {offsets = [0, 0], sizes = [8, 32], strides = [1, 1]} : vector<8x128xf32> to vector<8x32xf32>
    %168 = arith.negf %167 : vector<8x32xf32>
    %169 = math.exp %168 : vector<8x32xf32>
    %cst_38 = arith.constant 1.000000e+00 : f32
    %170 = vector.broadcast %cst_38 : f32 to vector<8x32xf32>
    %171 = arith.addf %170, %169 : vector<8x32xf32>
    %172 = arith.divf %170, %171 : vector<8x32xf32>
    %173 = vector.extract_strided_slice %166 {offsets = [0, 32], sizes = [8, 32], strides = [1, 1]} : vector<8x128xf32> to vector<8x32xf32>
    %174 = arith.negf %173 : vector<8x32xf32>
    %175 = math.exp %174 : vector<8x32xf32>
    %cst_39 = arith.constant 1.000000e+00 : f32
    %176 = vector.broadcast %cst_39 : f32 to vector<8x32xf32>
    %177 = arith.addf %176, %175 : vector<8x32xf32>
    %178 = arith.divf %176, %177 : vector<8x32xf32>
    %179 = vector.extract_strided_slice %166 {offsets = [0, 64], sizes = [8, 32], strides = [1, 1]} : vector<8x128xf32> to vector<8x32xf32>
    %180 = math.tanh %179 : vector<8x32xf32>
    %181 = vector.extract_strided_slice %166 {offsets = [0, 96], sizes = [8, 32], strides = [1, 1]} : vector<8x128xf32> to vector<8x32xf32>
    %182 = arith.negf %181 : vector<8x32xf32>
    %183 = math.exp %182 : vector<8x32xf32>
    %cst_40 = arith.constant 1.000000e+00 : f32
    %184 = vector.broadcast %cst_40 : f32 to vector<8x32xf32>
    %185 = arith.addf %184, %183 : vector<8x32xf32>
    %186 = arith.divf %184, %185 : vector<8x32xf32>
    %187 = arith.mulf %178, %126 : vector<8x32xf32>
    %188 = arith.mulf %172, %180 : vector<8x32xf32>
    %189 = arith.addf %187, %188 : vector<8x32xf32>
    %190 = math.tanh %189 : vector<8x32xf32>
    %191 = arith.mulf %186, %190 : vector<8x32xf32>
    %c3_i32 = arith.constant 3 : i32
    %192 = arith.index_cast %c3_i32 : i32 to index
    %c0_41 = arith.constant 0 : index
    %c0_42 = arith.constant 0 : index
    %193 = vector.load %arg1[%192, %c0_41, %c0_42] : memref<8x8x256xf32, #tpu.memory_space<vmem>>, vector<1x8x256xf32>
    %194 = vector.shape_cast %193 : vector<1x8x256xf32> to vector<8x256xf32>
    %c7_i32_43 = arith.constant 7 : i32
    %195 = arith.subi %c7_i32_43, %c3_i32 : i32
    %196 = arith.index_cast %195 : i32 to index
    %c0_44 = arith.constant 0 : index
    %c0_45 = arith.constant 0 : index
    %197 = vector.load %arg1[%196, %c0_44, %c0_45] : memref<8x8x256xf32, #tpu.memory_space<vmem>>, vector<1x8x256xf32>
    %198 = vector.shape_cast %197 : vector<1x8x256xf32> to vector<8x256xf32>
    %199 = vector.extract_strided_slice %194 {offsets = [0, 0], sizes = [8, 128], strides = [1, 1]} : vector<8x256xf32> to vector<8x128xf32>
    %cst_46 = arith.constant dense<0.000000e+00> : vector<8x128xf32>
    %200 = tpu.matmul %163, %0, %cst_46 {dimension_numbers = #tpu.dot_dimension_numbers<[1], [0], [0], [1], [0, 0, 1, 1], [], []>} : vector<8x32xf32>, vector<32x128xf32>, vector<8x128xf32> -> vector<8x128xf32>
    %201 = arith.addf %199, %200 : vector<8x128xf32>
    %202 = vector.extract_strided_slice %201 {offsets = [0, 0], sizes = [8, 32], strides = [1, 1]} : vector<8x128xf32> to vector<8x32xf32>
    %203 = arith.negf %202 : vector<8x32xf32>
    %204 = math.exp %203 : vector<8x32xf32>
    %cst_47 = arith.constant 1.000000e+00 : f32
    %205 = vector.broadcast %cst_47 : f32 to vector<8x32xf32>
    %206 = arith.addf %205, %204 : vector<8x32xf32>
    %207 = arith.divf %205, %206 : vector<8x32xf32>
    %208 = vector.extract_strided_slice %201 {offsets = [0, 32], sizes = [8, 32], strides = [1, 1]} : vector<8x128xf32> to vector<8x32xf32>
    %209 = arith.negf %208 : vector<8x32xf32>
    %210 = math.exp %209 : vector<8x32xf32>
    %cst_48 = arith.constant 1.000000e+00 : f32
    %211 = vector.broadcast %cst_48 : f32 to vector<8x32xf32>
    %212 = arith.addf %211, %210 : vector<8x32xf32>
    %213 = arith.divf %211, %212 : vector<8x32xf32>
    %214 = vector.extract_strided_slice %201 {offsets = [0, 64], sizes = [8, 32], strides = [1, 1]} : vector<8x128xf32> to vector<8x32xf32>
    %215 = math.tanh %214 : vector<8x32xf32>
    %216 = vector.extract_strided_slice %201 {offsets = [0, 96], sizes = [8, 32], strides = [1, 1]} : vector<8x128xf32> to vector<8x32xf32>
    %217 = arith.negf %216 : vector<8x32xf32>
    %218 = math.exp %217 : vector<8x32xf32>
    %cst_49 = arith.constant 1.000000e+00 : f32
    %219 = vector.broadcast %cst_49 : f32 to vector<8x32xf32>
    %220 = arith.addf %219, %218 : vector<8x32xf32>
    %221 = arith.divf %219, %220 : vector<8x32xf32>
    %222 = arith.mulf %213, %161 : vector<8x32xf32>
    %223 = arith.mulf %207, %215 : vector<8x32xf32>
    %224 = arith.addf %222, %223 : vector<8x32xf32>
    %225 = math.tanh %224 : vector<8x32xf32>
    %226 = arith.mulf %221, %225 : vector<8x32xf32>
    %227 = vector.extract_strided_slice %198 {offsets = [0, 128], sizes = [8, 128], strides = [1, 1]} : vector<8x256xf32> to vector<8x128xf32>
    %cst_50 = arith.constant dense<0.000000e+00> : vector<8x128xf32>
    %228 = tpu.matmul %191, %1, %cst_50 {dimension_numbers = #tpu.dot_dimension_numbers<[1], [0], [0], [1], [0, 0, 1, 1], [], []>} : vector<8x32xf32>, vector<32x128xf32>, vector<8x128xf32> -> vector<8x128xf32>
    %229 = arith.addf %227, %228 : vector<8x128xf32>
    %230 = vector.extract_strided_slice %229 {offsets = [0, 0], sizes = [8, 32], strides = [1, 1]} : vector<8x128xf32> to vector<8x32xf32>
    %231 = arith.negf %230 : vector<8x32xf32>
    %232 = math.exp %231 : vector<8x32xf32>
    %cst_51 = arith.constant 1.000000e+00 : f32
    %233 = vector.broadcast %cst_51 : f32 to vector<8x32xf32>
    %234 = arith.addf %233, %232 : vector<8x32xf32>
    %235 = arith.divf %233, %234 : vector<8x32xf32>
    %236 = vector.extract_strided_slice %229 {offsets = [0, 32], sizes = [8, 32], strides = [1, 1]} : vector<8x128xf32> to vector<8x32xf32>
    %237 = arith.negf %236 : vector<8x32xf32>
    %238 = math.exp %237 : vector<8x32xf32>
    %cst_52 = arith.constant 1.000000e+00 : f32
    %239 = vector.broadcast %cst_52 : f32 to vector<8x32xf32>
    %240 = arith.addf %239, %238 : vector<8x32xf32>
    %241 = arith.divf %239, %240 : vector<8x32xf32>
    %242 = vector.extract_strided_slice %229 {offsets = [0, 64], sizes = [8, 32], strides = [1, 1]} : vector<8x128xf32> to vector<8x32xf32>
    %243 = math.tanh %242 : vector<8x32xf32>
    %244 = vector.extract_strided_slice %229 {offsets = [0, 96], sizes = [8, 32], strides = [1, 1]} : vector<8x128xf32> to vector<8x32xf32>
    %245 = arith.negf %244 : vector<8x32xf32>
    %246 = math.exp %245 : vector<8x32xf32>
    %cst_53 = arith.constant 1.000000e+00 : f32
    %247 = vector.broadcast %cst_53 : f32 to vector<8x32xf32>
    %248 = arith.addf %247, %246 : vector<8x32xf32>
    %249 = arith.divf %247, %248 : vector<8x32xf32>
    %250 = arith.mulf %241, %189 : vector<8x32xf32>
    %251 = arith.mulf %235, %243 : vector<8x32xf32>
    %252 = arith.addf %250, %251 : vector<8x32xf32>
    %253 = math.tanh %252 : vector<8x32xf32>
    %254 = arith.mulf %249, %253 : vector<8x32xf32>
    %c4_i32 = arith.constant 4 : i32
    %255 = arith.index_cast %c4_i32 : i32 to index
    %c0_54 = arith.constant 0 : index
    %c0_55 = arith.constant 0 : index
    %256 = vector.load %arg1[%255, %c0_54, %c0_55] : memref<8x8x256xf32, #tpu.memory_space<vmem>>, vector<1x8x256xf32>
    %257 = vector.shape_cast %256 : vector<1x8x256xf32> to vector<8x256xf32>
    %c7_i32_56 = arith.constant 7 : i32
    %258 = arith.subi %c7_i32_56, %c4_i32 : i32
    %259 = arith.index_cast %258 : i32 to index
    %c0_57 = arith.constant 0 : index
    %c0_58 = arith.constant 0 : index
    %260 = vector.load %arg1[%259, %c0_57, %c0_58] : memref<8x8x256xf32, #tpu.memory_space<vmem>>, vector<1x8x256xf32>
    %261 = vector.shape_cast %260 : vector<1x8x256xf32> to vector<8x256xf32>
    %262 = vector.extract_strided_slice %257 {offsets = [0, 0], sizes = [8, 128], strides = [1, 1]} : vector<8x256xf32> to vector<8x128xf32>
    %cst_59 = arith.constant dense<0.000000e+00> : vector<8x128xf32>
    %263 = tpu.matmul %226, %0, %cst_59 {dimension_numbers = #tpu.dot_dimension_numbers<[1], [0], [0], [1], [0, 0, 1, 1], [], []>} : vector<8x32xf32>, vector<32x128xf32>, vector<8x128xf32> -> vector<8x128xf32>
    %264 = arith.addf %262, %263 : vector<8x128xf32>
    %265 = vector.extract_strided_slice %264 {offsets = [0, 0], sizes = [8, 32], strides = [1, 1]} : vector<8x128xf32> to vector<8x32xf32>
    %266 = arith.negf %265 : vector<8x32xf32>
    %267 = math.exp %266 : vector<8x32xf32>
    %cst_60 = arith.constant 1.000000e+00 : f32
    %268 = vector.broadcast %cst_60 : f32 to vector<8x32xf32>
    %269 = arith.addf %268, %267 : vector<8x32xf32>
    %270 = arith.divf %268, %269 : vector<8x32xf32>
    %271 = vector.extract_strided_slice %264 {offsets = [0, 32], sizes = [8, 32], strides = [1, 1]} : vector<8x128xf32> to vector<8x32xf32>
    %272 = arith.negf %271 : vector<8x32xf32>
    %273 = math.exp %272 : vector<8x32xf32>
    %cst_61 = arith.constant 1.000000e+00 : f32
    %274 = vector.broadcast %cst_61 : f32 to vector<8x32xf32>
    %275 = arith.addf %274, %273 : vector<8x32xf32>
    %276 = arith.divf %274, %275 : vector<8x32xf32>
    %277 = vector.extract_strided_slice %264 {offsets = [0, 64], sizes = [8, 32], strides = [1, 1]} : vector<8x128xf32> to vector<8x32xf32>
    %278 = math.tanh %277 : vector<8x32xf32>
    %279 = vector.extract_strided_slice %264 {offsets = [0, 96], sizes = [8, 32], strides = [1, 1]} : vector<8x128xf32> to vector<8x32xf32>
    %280 = arith.negf %279 : vector<8x32xf32>
    %281 = math.exp %280 : vector<8x32xf32>
    %cst_62 = arith.constant 1.000000e+00 : f32
    %282 = vector.broadcast %cst_62 : f32 to vector<8x32xf32>
    %283 = arith.addf %282, %281 : vector<8x32xf32>
    %284 = arith.divf %282, %283 : vector<8x32xf32>
    %285 = arith.mulf %276, %224 : vector<8x32xf32>
    %286 = arith.mulf %270, %278 : vector<8x32xf32>
    %287 = arith.addf %285, %286 : vector<8x32xf32>
    %288 = math.tanh %287 : vector<8x32xf32>
    %289 = arith.mulf %284, %288 : vector<8x32xf32>
    %290 = vector.extract_strided_slice %261 {offsets = [0, 128], sizes = [8, 128], strides = [1, 1]} : vector<8x256xf32> to vector<8x128xf32>
    %cst_63 = arith.constant dense<0.000000e+00> : vector<8x128xf32>
    %291 = tpu.matmul %254, %1, %cst_63 {dimension_numbers = #tpu.dot_dimension_numbers<[1], [0], [0], [1], [0, 0, 1, 1], [], []>} : vector<8x32xf32>, vector<32x128xf32>, vector<8x128xf32> -> vector<8x128xf32>
    %292 = arith.addf %290, %291 : vector<8x128xf32>
    %293 = vector.extract_strided_slice %292 {offsets = [0, 0], sizes = [8, 32], strides = [1, 1]} : vector<8x128xf32> to vector<8x32xf32>
    %294 = arith.negf %293 : vector<8x32xf32>
    %295 = math.exp %294 : vector<8x32xf32>
    %cst_64 = arith.constant 1.000000e+00 : f32
    %296 = vector.broadcast %cst_64 : f32 to vector<8x32xf32>
    %297 = arith.addf %296, %295 : vector<8x32xf32>
    %298 = arith.divf %296, %297 : vector<8x32xf32>
    %299 = vector.extract_strided_slice %292 {offsets = [0, 32], sizes = [8, 32], strides = [1, 1]} : vector<8x128xf32> to vector<8x32xf32>
    %300 = arith.negf %299 : vector<8x32xf32>
    %301 = math.exp %300 : vector<8x32xf32>
    %cst_65 = arith.constant 1.000000e+00 : f32
    %302 = vector.broadcast %cst_65 : f32 to vector<8x32xf32>
    %303 = arith.addf %302, %301 : vector<8x32xf32>
    %304 = arith.divf %302, %303 : vector<8x32xf32>
    %305 = vector.extract_strided_slice %292 {offsets = [0, 64], sizes = [8, 32], strides = [1, 1]} : vector<8x128xf32> to vector<8x32xf32>
    %306 = math.tanh %305 : vector<8x32xf32>
    %307 = vector.extract_strided_slice %292 {offsets = [0, 96], sizes = [8, 32], strides = [1, 1]} : vector<8x128xf32> to vector<8x32xf32>
    %308 = arith.negf %307 : vector<8x32xf32>
    %309 = math.exp %308 : vector<8x32xf32>
    %cst_66 = arith.constant 1.000000e+00 : f32
    %310 = vector.broadcast %cst_66 : f32 to vector<8x32xf32>
    %311 = arith.addf %310, %309 : vector<8x32xf32>
    %312 = arith.divf %310, %311 : vector<8x32xf32>
    %313 = arith.mulf %304, %252 : vector<8x32xf32>
    %314 = arith.mulf %298, %306 : vector<8x32xf32>
    %315 = arith.addf %313, %314 : vector<8x32xf32>
    %316 = math.tanh %315 : vector<8x32xf32>
    %317 = arith.mulf %312, %316 : vector<8x32xf32>
    %c5_i32 = arith.constant 5 : i32
    %318 = arith.index_cast %c5_i32 : i32 to index
    %c0_67 = arith.constant 0 : index
    %c0_68 = arith.constant 0 : index
    %319 = vector.load %arg1[%318, %c0_67, %c0_68] : memref<8x8x256xf32, #tpu.memory_space<vmem>>, vector<1x8x256xf32>
    %320 = vector.shape_cast %319 : vector<1x8x256xf32> to vector<8x256xf32>
    %c7_i32_69 = arith.constant 7 : i32
    %321 = arith.subi %c7_i32_69, %c5_i32 : i32
    %322 = arith.index_cast %321 : i32 to index
    %c0_70 = arith.constant 0 : index
    %c0_71 = arith.constant 0 : index
    %323 = vector.load %arg1[%322, %c0_70, %c0_71] : memref<8x8x256xf32, #tpu.memory_space<vmem>>, vector<1x8x256xf32>
    %324 = vector.shape_cast %323 : vector<1x8x256xf32> to vector<8x256xf32>
    %325 = vector.extract_strided_slice %320 {offsets = [0, 0], sizes = [8, 128], strides = [1, 1]} : vector<8x256xf32> to vector<8x128xf32>
    %cst_72 = arith.constant dense<0.000000e+00> : vector<8x128xf32>
    %326 = tpu.matmul %289, %0, %cst_72 {dimension_numbers = #tpu.dot_dimension_numbers<[1], [0], [0], [1], [0, 0, 1, 1], [], []>} : vector<8x32xf32>, vector<32x128xf32>, vector<8x128xf32> -> vector<8x128xf32>
    %327 = arith.addf %325, %326 : vector<8x128xf32>
    %328 = vector.extract_strided_slice %327 {offsets = [0, 0], sizes = [8, 32], strides = [1, 1]} : vector<8x128xf32> to vector<8x32xf32>
    %329 = arith.negf %328 : vector<8x32xf32>
    %330 = math.exp %329 : vector<8x32xf32>
    %cst_73 = arith.constant 1.000000e+00 : f32
    %331 = vector.broadcast %cst_73 : f32 to vector<8x32xf32>
    %332 = arith.addf %331, %330 : vector<8x32xf32>
    %333 = arith.divf %331, %332 : vector<8x32xf32>
    %334 = vector.extract_strided_slice %327 {offsets = [0, 32], sizes = [8, 32], strides = [1, 1]} : vector<8x128xf32> to vector<8x32xf32>
    %335 = arith.negf %334 : vector<8x32xf32>
    %336 = math.exp %335 : vector<8x32xf32>
    %cst_74 = arith.constant 1.000000e+00 : f32
    %337 = vector.broadcast %cst_74 : f32 to vector<8x32xf32>
    %338 = arith.addf %337, %336 : vector<8x32xf32>
    %339 = arith.divf %337, %338 : vector<8x32xf32>
    %340 = vector.extract_strided_slice %327 {offsets = [0, 64], sizes = [8, 32], strides = [1, 1]} : vector<8x128xf32> to vector<8x32xf32>
    %341 = math.tanh %340 : vector<8x32xf32>
    %342 = vector.extract_strided_slice %327 {offsets = [0, 96], sizes = [8, 32], strides = [1, 1]} : vector<8x128xf32> to vector<8x32xf32>
    %343 = arith.negf %342 : vector<8x32xf32>
    %344 = math.exp %343 : vector<8x32xf32>
    %cst_75 = arith.constant 1.000000e+00 : f32
    %345 = vector.broadcast %cst_75 : f32 to vector<8x32xf32>
    %346 = arith.addf %345, %344 : vector<8x32xf32>
    %347 = arith.divf %345, %346 : vector<8x32xf32>
    %348 = arith.mulf %339, %287 : vector<8x32xf32>
    %349 = arith.mulf %333, %341 : vector<8x32xf32>
    %350 = arith.addf %348, %349 : vector<8x32xf32>
    %351 = math.tanh %350 : vector<8x32xf32>
    %352 = arith.mulf %347, %351 : vector<8x32xf32>
    %353 = vector.extract_strided_slice %324 {offsets = [0, 128], sizes = [8, 128], strides = [1, 1]} : vector<8x256xf32> to vector<8x128xf32>
    %cst_76 = arith.constant dense<0.000000e+00> : vector<8x128xf32>
    %354 = tpu.matmul %317, %1, %cst_76 {dimension_numbers = #tpu.dot_dimension_numbers<[1], [0], [0], [1], [0, 0, 1, 1], [], []>} : vector<8x32xf32>, vector<32x128xf32>, vector<8x128xf32> -> vector<8x128xf32>
    %355 = arith.addf %353, %354 : vector<8x128xf32>
    %356 = vector.extract_strided_slice %355 {offsets = [0, 0], sizes = [8, 32], strides = [1, 1]} : vector<8x128xf32> to vector<8x32xf32>
    %357 = arith.negf %356 : vector<8x32xf32>
    %358 = math.exp %357 : vector<8x32xf32>
    %cst_77 = arith.constant 1.000000e+00 : f32
    %359 = vector.broadcast %cst_77 : f32 to vector<8x32xf32>
    %360 = arith.addf %359, %358 : vector<8x32xf32>
    %361 = arith.divf %359, %360 : vector<8x32xf32>
    %362 = vector.extract_strided_slice %355 {offsets = [0, 32], sizes = [8, 32], strides = [1, 1]} : vector<8x128xf32> to vector<8x32xf32>
    %363 = arith.negf %362 : vector<8x32xf32>
    %364 = math.exp %363 : vector<8x32xf32>
    %cst_78 = arith.constant 1.000000e+00 : f32
    %365 = vector.broadcast %cst_78 : f32 to vector<8x32xf32>
    %366 = arith.addf %365, %364 : vector<8x32xf32>
    %367 = arith.divf %365, %366 : vector<8x32xf32>
    %368 = vector.extract_strided_slice %355 {offsets = [0, 64], sizes = [8, 32], strides = [1, 1]} : vector<8x128xf32> to vector<8x32xf32>
    %369 = math.tanh %368 : vector<8x32xf32>
    %370 = vector.extract_strided_slice %355 {offsets = [0, 96], sizes = [8, 32], strides = [1, 1]} : vector<8x128xf32> to vector<8x32xf32>
    %371 = arith.negf %370 : vector<8x32xf32>
    %372 = math.exp %371 : vector<8x32xf32>
    %cst_79 = arith.constant 1.000000e+00 : f32
    %373 = vector.broadcast %cst_79 : f32 to vector<8x32xf32>
    %374 = arith.addf %373, %372 : vector<8x32xf32>
    %375 = arith.divf %373, %374 : vector<8x32xf32>
    %376 = arith.mulf %367, %315 : vector<8x32xf32>
    %377 = arith.mulf %361, %369 : vector<8x32xf32>
    %378 = arith.addf %376, %377 : vector<8x32xf32>
    %379 = math.tanh %378 : vector<8x32xf32>
    %380 = arith.mulf %375, %379 : vector<8x32xf32>
    %c6_i32 = arith.constant 6 : i32
    %381 = arith.index_cast %c6_i32 : i32 to index
    %c0_80 = arith.constant 0 : index
    %c0_81 = arith.constant 0 : index
    %382 = vector.load %arg1[%381, %c0_80, %c0_81] : memref<8x8x256xf32, #tpu.memory_space<vmem>>, vector<1x8x256xf32>
    %383 = vector.shape_cast %382 : vector<1x8x256xf32> to vector<8x256xf32>
    %c7_i32_82 = arith.constant 7 : i32
    %384 = arith.subi %c7_i32_82, %c6_i32 : i32
    %385 = arith.index_cast %384 : i32 to index
    %c0_83 = arith.constant 0 : index
    %c0_84 = arith.constant 0 : index
    %386 = vector.load %arg1[%385, %c0_83, %c0_84] : memref<8x8x256xf32, #tpu.memory_space<vmem>>, vector<1x8x256xf32>
    %387 = vector.shape_cast %386 : vector<1x8x256xf32> to vector<8x256xf32>
    %388 = vector.extract_strided_slice %383 {offsets = [0, 0], sizes = [8, 128], strides = [1, 1]} : vector<8x256xf32> to vector<8x128xf32>
    %cst_85 = arith.constant dense<0.000000e+00> : vector<8x128xf32>
    %389 = tpu.matmul %352, %0, %cst_85 {dimension_numbers = #tpu.dot_dimension_numbers<[1], [0], [0], [1], [0, 0, 1, 1], [], []>} : vector<8x32xf32>, vector<32x128xf32>, vector<8x128xf32> -> vector<8x128xf32>
    %390 = arith.addf %388, %389 : vector<8x128xf32>
    %391 = vector.extract_strided_slice %390 {offsets = [0, 0], sizes = [8, 32], strides = [1, 1]} : vector<8x128xf32> to vector<8x32xf32>
    %392 = arith.negf %391 : vector<8x32xf32>
    %393 = math.exp %392 : vector<8x32xf32>
    %cst_86 = arith.constant 1.000000e+00 : f32
    %394 = vector.broadcast %cst_86 : f32 to vector<8x32xf32>
    %395 = arith.addf %394, %393 : vector<8x32xf32>
    %396 = arith.divf %394, %395 : vector<8x32xf32>
    %397 = vector.extract_strided_slice %390 {offsets = [0, 32], sizes = [8, 32], strides = [1, 1]} : vector<8x128xf32> to vector<8x32xf32>
    %398 = arith.negf %397 : vector<8x32xf32>
    %399 = math.exp %398 : vector<8x32xf32>
    %cst_87 = arith.constant 1.000000e+00 : f32
    %400 = vector.broadcast %cst_87 : f32 to vector<8x32xf32>
    %401 = arith.addf %400, %399 : vector<8x32xf32>
    %402 = arith.divf %400, %401 : vector<8x32xf32>
    %403 = vector.extract_strided_slice %390 {offsets = [0, 64], sizes = [8, 32], strides = [1, 1]} : vector<8x128xf32> to vector<8x32xf32>
    %404 = math.tanh %403 : vector<8x32xf32>
    %405 = vector.extract_strided_slice %390 {offsets = [0, 96], sizes = [8, 32], strides = [1, 1]} : vector<8x128xf32> to vector<8x32xf32>
    %406 = arith.negf %405 : vector<8x32xf32>
    %407 = math.exp %406 : vector<8x32xf32>
    %cst_88 = arith.constant 1.000000e+00 : f32
    %408 = vector.broadcast %cst_88 : f32 to vector<8x32xf32>
    %409 = arith.addf %408, %407 : vector<8x32xf32>
    %410 = arith.divf %408, %409 : vector<8x32xf32>
    %411 = arith.mulf %402, %350 : vector<8x32xf32>
    %412 = arith.mulf %396, %404 : vector<8x32xf32>
    %413 = arith.addf %411, %412 : vector<8x32xf32>
    %414 = math.tanh %413 : vector<8x32xf32>
    %415 = arith.mulf %410, %414 : vector<8x32xf32>
    %416 = vector.extract_strided_slice %387 {offsets = [0, 128], sizes = [8, 128], strides = [1, 1]} : vector<8x256xf32> to vector<8x128xf32>
    %cst_89 = arith.constant dense<0.000000e+00> : vector<8x128xf32>
    %417 = tpu.matmul %380, %1, %cst_89 {dimension_numbers = #tpu.dot_dimension_numbers<[1], [0], [0], [1], [0, 0, 1, 1], [], []>} : vector<8x32xf32>, vector<32x128xf32>, vector<8x128xf32> -> vector<8x128xf32>
    %418 = arith.addf %416, %417 : vector<8x128xf32>
    %419 = vector.extract_strided_slice %418 {offsets = [0, 0], sizes = [8, 32], strides = [1, 1]} : vector<8x128xf32> to vector<8x32xf32>
    %420 = arith.negf %419 : vector<8x32xf32>
    %421 = math.exp %420 : vector<8x32xf32>
    %cst_90 = arith.constant 1.000000e+00 : f32
    %422 = vector.broadcast %cst_90 : f32 to vector<8x32xf32>
    %423 = arith.addf %422, %421 : vector<8x32xf32>
    %424 = arith.divf %422, %423 : vector<8x32xf32>
    %425 = vector.extract_strided_slice %418 {offsets = [0, 32], sizes = [8, 32], strides = [1, 1]} : vector<8x128xf32> to vector<8x32xf32>
    %426 = arith.negf %425 : vector<8x32xf32>
    %427 = math.exp %426 : vector<8x32xf32>
    %cst_91 = arith.constant 1.000000e+00 : f32
    %428 = vector.broadcast %cst_91 : f32 to vector<8x32xf32>
    %429 = arith.addf %428, %427 : vector<8x32xf32>
    %430 = arith.divf %428, %429 : vector<8x32xf32>
    %431 = vector.extract_strided_slice %418 {offsets = [0, 64], sizes = [8, 32], strides = [1, 1]} : vector<8x128xf32> to vector<8x32xf32>
    %432 = math.tanh %431 : vector<8x32xf32>
    %433 = vector.extract_strided_slice %418 {offsets = [0, 96], sizes = [8, 32], strides = [1, 1]} : vector<8x128xf32> to vector<8x32xf32>
    %434 = arith.negf %433 : vector<8x32xf32>
    %435 = math.exp %434 : vector<8x32xf32>
    %cst_92 = arith.constant 1.000000e+00 : f32
    %436 = vector.broadcast %cst_92 : f32 to vector<8x32xf32>
    %437 = arith.addf %436, %435 : vector<8x32xf32>
    %438 = arith.divf %436, %437 : vector<8x32xf32>
    %439 = arith.mulf %430, %378 : vector<8x32xf32>
    %440 = arith.mulf %424, %432 : vector<8x32xf32>
    %441 = arith.addf %439, %440 : vector<8x32xf32>
    %442 = math.tanh %441 : vector<8x32xf32>
    %443 = arith.mulf %438, %442 : vector<8x32xf32>
    %c7_i32_93 = arith.constant 7 : i32
    %444 = arith.index_cast %c7_i32_93 : i32 to index
    %c0_94 = arith.constant 0 : index
    %c0_95 = arith.constant 0 : index
    %445 = vector.load %arg1[%444, %c0_94, %c0_95] : memref<8x8x256xf32, #tpu.memory_space<vmem>>, vector<1x8x256xf32>
    %446 = vector.shape_cast %445 : vector<1x8x256xf32> to vector<8x256xf32>
    %c7_i32_96 = arith.constant 7 : i32
    %447 = arith.subi %c7_i32_96, %c7_i32_93 : i32
    %448 = arith.index_cast %447 : i32 to index
    %c0_97 = arith.constant 0 : index
    %c0_98 = arith.constant 0 : index
    %449 = vector.load %arg1[%448, %c0_97, %c0_98] : memref<8x8x256xf32, #tpu.memory_space<vmem>>, vector<1x8x256xf32>
    %450 = vector.shape_cast %449 : vector<1x8x256xf32> to vector<8x256xf32>
    %451 = vector.extract_strided_slice %446 {offsets = [0, 0], sizes = [8, 128], strides = [1, 1]} : vector<8x256xf32> to vector<8x128xf32>
    %cst_99 = arith.constant dense<0.000000e+00> : vector<8x128xf32>
    %452 = tpu.matmul %415, %0, %cst_99 {dimension_numbers = #tpu.dot_dimension_numbers<[1], [0], [0], [1], [0, 0, 1, 1], [], []>} : vector<8x32xf32>, vector<32x128xf32>, vector<8x128xf32> -> vector<8x128xf32>
    %453 = arith.addf %451, %452 : vector<8x128xf32>
    %454 = vector.extract_strided_slice %453 {offsets = [0, 0], sizes = [8, 32], strides = [1, 1]} : vector<8x128xf32> to vector<8x32xf32>
    %455 = arith.negf %454 : vector<8x32xf32>
    %456 = math.exp %455 : vector<8x32xf32>
    %cst_100 = arith.constant 1.000000e+00 : f32
    %457 = vector.broadcast %cst_100 : f32 to vector<8x32xf32>
    %458 = arith.addf %457, %456 : vector<8x32xf32>
    %459 = arith.divf %457, %458 : vector<8x32xf32>
    %460 = vector.extract_strided_slice %453 {offsets = [0, 32], sizes = [8, 32], strides = [1, 1]} : vector<8x128xf32> to vector<8x32xf32>
    %461 = arith.negf %460 : vector<8x32xf32>
    %462 = math.exp %461 : vector<8x32xf32>
    %cst_101 = arith.constant 1.000000e+00 : f32
    %463 = vector.broadcast %cst_101 : f32 to vector<8x32xf32>
    %464 = arith.addf %463, %462 : vector<8x32xf32>
    %465 = arith.divf %463, %464 : vector<8x32xf32>
    %466 = vector.extract_strided_slice %453 {offsets = [0, 64], sizes = [8, 32], strides = [1, 1]} : vector<8x128xf32> to vector<8x32xf32>
    %467 = math.tanh %466 : vector<8x32xf32>
    %468 = vector.extract_strided_slice %453 {offsets = [0, 96], sizes = [8, 32], strides = [1, 1]} : vector<8x128xf32> to vector<8x32xf32>
    %469 = arith.negf %468 : vector<8x32xf32>
    %470 = math.exp %469 : vector<8x32xf32>
    %cst_102 = arith.constant 1.000000e+00 : f32
    %471 = vector.broadcast %cst_102 : f32 to vector<8x32xf32>
    %472 = arith.addf %471, %470 : vector<8x32xf32>
    %473 = arith.divf %471, %472 : vector<8x32xf32>
    %474 = arith.mulf %465, %413 : vector<8x32xf32>
    %475 = arith.mulf %459, %467 : vector<8x32xf32>
    %476 = arith.addf %474, %475 : vector<8x32xf32>
    %477 = math.tanh %476 : vector<8x32xf32>
    %478 = arith.mulf %473, %477 : vector<8x32xf32>
    %479 = vector.extract_strided_slice %450 {offsets = [0, 128], sizes = [8, 128], strides = [1, 1]} : vector<8x256xf32> to vector<8x128xf32>
    %cst_103 = arith.constant dense<0.000000e+00> : vector<8x128xf32>
    %480 = tpu.matmul %443, %1, %cst_103 {dimension_numbers = #tpu.dot_dimension_numbers<[1], [0], [0], [1], [0, 0, 1, 1], [], []>} : vector<8x32xf32>, vector<32x128xf32>, vector<8x128xf32> -> vector<8x128xf32>
    %481 = arith.addf %479, %480 : vector<8x128xf32>
    %482 = vector.extract_strided_slice %481 {offsets = [0, 0], sizes = [8, 32], strides = [1, 1]} : vector<8x128xf32> to vector<8x32xf32>
    %483 = arith.negf %482 : vector<8x32xf32>
    %484 = math.exp %483 : vector<8x32xf32>
    %cst_104 = arith.constant 1.000000e+00 : f32
    %485 = vector.broadcast %cst_104 : f32 to vector<8x32xf32>
    %486 = arith.addf %485, %484 : vector<8x32xf32>
    %487 = arith.divf %485, %486 : vector<8x32xf32>
    %488 = vector.extract_strided_slice %481 {offsets = [0, 32], sizes = [8, 32], strides = [1, 1]} : vector<8x128xf32> to vector<8x32xf32>
    %489 = arith.negf %488 : vector<8x32xf32>
    %490 = math.exp %489 : vector<8x32xf32>
    %cst_105 = arith.constant 1.000000e+00 : f32
    %491 = vector.broadcast %cst_105 : f32 to vector<8x32xf32>
    %492 = arith.addf %491, %490 : vector<8x32xf32>
    %493 = arith.divf %491, %492 : vector<8x32xf32>
    %494 = vector.extract_strided_slice %481 {offsets = [0, 64], sizes = [8, 32], strides = [1, 1]} : vector<8x128xf32> to vector<8x32xf32>
    %495 = math.tanh %494 : vector<8x32xf32>
    %496 = vector.extract_strided_slice %481 {offsets = [0, 96], sizes = [8, 32], strides = [1, 1]} : vector<8x128xf32> to vector<8x32xf32>
    %497 = arith.negf %496 : vector<8x32xf32>
    %498 = math.exp %497 : vector<8x32xf32>
    %cst_106 = arith.constant 1.000000e+00 : f32
    %499 = vector.broadcast %cst_106 : f32 to vector<8x32xf32>
    %500 = arith.addf %499, %498 : vector<8x32xf32>
    %501 = arith.divf %499, %500 : vector<8x32xf32>
    %502 = arith.mulf %493, %441 : vector<8x32xf32>
    %503 = arith.mulf %487, %495 : vector<8x32xf32>
    %504 = arith.addf %502, %503 : vector<8x32xf32>
    %505 = math.tanh %504 : vector<8x32xf32>
    %506 = arith.mulf %501, %505 : vector<8x32xf32>
    %c8_i32 = arith.constant 8 : i32
    %507 = tpu.concatenate %478, %506 in 1 : vector<8x32xf32>, vector<8x32xf32> -> vector<8x64xf32>
    %c0_107 = arith.constant 0 : index
    %c0_108 = arith.constant 0 : index
    %508 = vector.load %arg4[%c0_107, %c0_108] : memref<64x1xf32, #tpu.memory_space<vmem>>, vector<64x1xf32>
    %cst_109 = arith.constant dense<0.000000e+00> : vector<8x1xf32>
    %509 = tpu.matmul %507, %508, %cst_109 {dimension_numbers = #tpu.dot_dimension_numbers<[1], [0], [0], [1], [0, 0, 1, 1], [], []>} : vector<8x64xf32>, vector<64x1xf32>, vector<8x1xf32> -> vector<8x1xf32>
    %c0_110 = arith.constant 0 : index
    %c0_111 = arith.constant 0 : index
    %510 = vector.load %arg5[%c0_110, %c0_111] : memref<1x1xf32, #tpu.memory_space<vmem>>, vector<1x1xf32>
    %511 = vector.broadcast %510 : vector<1x1xf32> to vector<8x1xf32>
    %512 = arith.addf %509, %511 : vector<8x1xf32>
    %c0_112 = arith.constant 0 : index
    %c0_113 = arith.constant 0 : index
    %513 = vector.load %arg6[%c0_112, %c0_113] : memref<8x1xf32, #tpu.memory_space<vmem>>, vector<8x1xf32>
    tpu.vector_store %arg6[%c0_112, %c0_113], %512 {strides = array<i32>} : memref<8x1xf32, #tpu.memory_space<vmem>>, vector<8x1xf32>,
    return
  }
  func.func @transform_0(%arg0: i32) -> (i32, i32, i32) {
    %c0_i32 = arith.constant 0 : i32
    %c0_i32_0 = arith.constant 0 : i32
    %c0_i32_1 = arith.constant 0 : i32
    return %c0_i32, %arg0, %c0_i32_0 : i32, i32, i32
  }
  func.func @transform_1(%arg0: i32) -> (i32, i32) {
    %c0_i32 = arith.constant 0 : i32
    %c0_i32_0 = arith.constant 0 : i32
    %c0_i32_1 = arith.constant 0 : i32
    return %c0_i32, %c0_i32_0 : i32, i32
  }
  func.func @transform_2(%arg0: i32) -> (i32, i32) {
    %c0_i32 = arith.constant 0 : i32
    %c0_i32_0 = arith.constant 0 : i32
    %c0_i32_1 = arith.constant 0 : i32
    return %c0_i32, %c0_i32_0 : i32, i32
  }
  func.func @transform_3(%arg0: i32) -> (i32, i32) {
    %c0_i32 = arith.constant 0 : i32
    %c0_i32_0 = arith.constant 0 : i32
    %c0_i32_1 = arith.constant 0 : i32
    return %c0_i32, %c0_i32_0 : i32, i32
  }
  func.func @transform_4(%arg0: i32) -> (i32, i32) {
    %c0_i32 = arith.constant 0 : i32
    %c0_i32_0 = arith.constant 0 : i32
    %c0_i32_1 = arith.constant 0 : i32
    return %c0_i32, %c0_i32_0 : i32, i32
  }
  func.func @transform_5(%arg0: i32) -> (i32, i32) {
    %c0_i32 = arith.constant 0 : i32
    %c0_i32_0 = arith.constant 0 : i32
    return %arg0, %c0_i32 : i32, i32
  }
}

</mosaic_0001>

<llo_original>
// kernel: message_history_rnn_forward.1
$region0: #{message_history_rnn_forward.1}
  #allocation0 [shape = 'u32[]', space=smem, size = 0x4, offset = 0x4, fixed_abs, tag = 'smem constant byte address 0x4 - core index']
  #allocation1 [shape = 'u32[144,128]{1,0:T(1,128)}', space=vmem, size = 0x12000, scoped, tag = 'internal scratch']
  #allocation2 [shape = 'f32[1,1]{1,0:T(1,128)S(1)}', space=vmem, size = 0x200, scoped, tag = 'scoped memory for message_history_rnn_forward.1']
  %s0 = inlined_call_operand.vmem [shape: f32[8,8,256], index: 0, kind: input, shape index: {}]
  %s1 = inlined_call_operand.vmem [shape: f32[32,128], index: 1, kind: input, shape index: {}]
  %s2 = inlined_call_operand.vmem [shape: f32[32,128], index: 2, kind: input, shape index: {}]
  %s3 = inlined_call_operand.vmem [shape: f32[64,1], index: 3, kind: input, shape index: {}]
  %s4 = inlined_call_operand.<no memory space> [shape: f32[1,1], index: 4, kind: input, shape index: {}]
  %s5 = inlined_call_operand.vmem [shape: f32[8,1], index: 5, kind: output, shape index: {}]
  %s6 = sld [smem:[#allocation0]]
  $region30: #{message_history_rnn_forward.1} parent=0
    _
  %s8 = ssub.s32 1, %s6
  %s9 = scalar_select 0, %s8, %s6
  %v10 = vstv %s4
  %11 = vst [vmem:[#allocation2] sm:$0x1] %v10
  // Predicated region
  $region2: #{message_history_rnn_forward.1} parent=0 // pred_check
    _
  $region3: #{message_history_rnn_forward.1} parent=0 // pred_check_branch
    %13 = sbr.rel (0) target = $region5
  $region4: #{message_history_rnn_forward.1} parent=0 // pred_region
    _
  $region5: #{message_history_rnn_forward.1} parent=0 // pred_fallthru
    _
  // Predicated region
  $region6: #{message_history_rnn_forward.1} parent=0 // pred_check
    _
  $region7: #{message_history_rnn_forward.1} parent=0 // pred_check_branch
    %15 = sbr.rel (0) target = $region9
  $region8: #{message_history_rnn_forward.1} parent=0 // pred_region
    _
  $region9: #{message_history_rnn_forward.1} parent=0 // pred_fallthru
    _
  // Predicated region
  $region10: #{message_history_rnn_forward.1} parent=0 // pred_check
    _
  $region11: #{message_history_rnn_forward.1} parent=0 // pred_check_branch
    %17 = sbr.rel (0) target = $region13
  $region12: #{message_history_rnn_forward.1} parent=0 // pred_region
    _
  $region13: #{message_history_rnn_forward.1} parent=0 // pred_fallthru
    _
  // Predicated region
  $region14: #{message_history_rnn_forward.1} parent=0 // pred_check
    _
  $region15: #{message_history_rnn_forward.1} parent=0 // pred_check_branch
    %19 = sbr.rel (0) target = $region17
  $region16: #{message_history_rnn_forward.1} parent=0 // pred_region
    _
  $region17: #{message_history_rnn_forward.1} parent=0 // pred_fallthru
    _
  // Predicated region
  $region18: #{message_history_rnn_forward.1} parent=0 // pred_check
    _
  $region19: #{message_history_rnn_forward.1} parent=0 // pred_check_branch
    %21 = sbr.rel (0) target = $region21
  $region20: #{message_history_rnn_forward.1} parent=0 // pred_region
    _
  $region21: #{message_history_rnn_forward.1} parent=0 // pred_fallthru
    _
  %v22 = vld [vmem:[%s1] sm:$0xff]
  %v23 = vld [vmem:[%s1 + $0x8] sm:$0xff]
  %v24 = vld [vmem:[%s1 + $0x10] sm:$0xff]
  %v25 = vld [vmem:[%s1 + $0x18] sm:$0xff]
  %v26 = vld [vmem:[%s2] sm:$0xff]
  %v27 = vld [vmem:[%s2 + $0x8] sm:$0xff]
  %v28 = vld [vmem:[%s2 + $0x10] sm:$0xff]
  %v29 = vld [vmem:[%s2 + $0x18] sm:$0xff]
  %v30 = vld [vmem:[%s0] sm:$0xff]
  %v31 = vld [vmem:[%s0 + $0x8] sm:$0xff]
  %s32 = scalar_lea.vmem %s0, 112
  %v33 = vld [vmem:[%s32] sm:$0xff]
  %v34 = vld [vmem:[%s32 + $0x8] sm:$0xff]
  %vm35 = vcmask 261120
  %v37 = vsel %vm35, 0.0, 0
  %39 = vmatprep.subr.mxu0 0.0
  %40 = vmatpush1.msra.mxu0 0.0
  %41 = vmatprep.subr.mxu0 0.0
  %42 = vmatpush1.msra.mxu0 0.0
  %43 = vmatprep.subr.mxu0 0.0
  %44 = vmatpush1.msra.mxu0 0.0
  %45 = vmatprep.subr.mxu0 0.0
  %46 = vmatpush1.msra.mxu0 0.0
  %47 = vmatprep.subr.mxu0 0.0
  %48 = vmatpush1.msra.mxu0 0.0
  %49 = vmatprep.subr.mxu0 0.0
  %50 = vmatpush1.msra.mxu0 0.0
  %51 = vmatprep.subr.mxu0 0.0
  %52 = vmatpush1.msra.mxu0 0.0
  %53 = vmatprep.subr.mxu0 0.0
  %54 = vmatpush1.msra.mxu0 0.0
  %55 = vmatprep.subr.mxu0 0.0
  %56 = vmatpush1.msra.mxu0 0.0
  %57 = vmatprep.subr.mxu0 0.0
  %58 = vmatpush1.msra.mxu0 0.0
  %59 = vmatprep.subr.mxu0 0.0
  %60 = vmatpush1.msra.mxu0 0.0
  %61 = vmatprep.subr.mxu0 0.0
  %62 = vmatpush1.msra.mxu0 0.0
  %63 = vmatprep.subr.mxu0 0.0
  %64 = vmatpush1.msra.mxu0 %v25
  %65 = vmatprep.subr.mxu0 0.0
  %66 = vmatpush1.msra.mxu0 %v24
  %67 = vmatprep.subr.mxu0 0.0
  %68 = vmatpush1.msra.mxu0 %v23
  %69 = vmatprep.subr.mxu0 0.0
  %70 = vmatpush1.msra.mxu0 %v22
  %71 = vmatprep.subr.mxu0 0.0
  %72 = vmatpush2.msra.mxu0 0.0
  %73 = vmatprep.subr.mxu0 0.0
  %74 = vmatpush2.msra.mxu0 0.0
  %75 = vmatprep.subr.mxu0 0.0
  %76 = vmatpush2.msra.mxu0 0.0
  %77 = vmatprep.subr.mxu0 0.0
  %78 = vmatpush2.msra.mxu0 0.0
  %79 = vmatprep.subr.mxu0 0.0
  %80 = vmatpush2.msra.mxu0 0.0
  %81 = vmatprep.subr.mxu0 0.0
  %82 = vmatpush2.msra.mxu0 0.0
  %83 = vmatprep.subr.mxu0 0.0
  %84 = vmatpush2.msra.mxu0 0.0
  %85 = vmatprep.subr.mxu0 0.0
  %86 = vmatpush2.msra.mxu0 0.0
  %87 = vmatprep.subr.mxu0 0.0
  %88 = vmatpush2.msra.mxu0 0.0
  %89 = vmatprep.subr.mxu0 0.0
  %90 = vmatpush2.msra.mxu0 0.0
  %91 = vmatprep.subr.mxu0 0.0
  %92 = vmatpush2.msra.mxu0 0.0
  %93 = vmatprep.subr.mxu0 0.0
  %94 = vmatpush2.msra.mxu0 0.0
  %95 = vmatprep.subr.mxu0 0.0
  %96 = vmatpush2.msra.mxu0 0.0
  %97 = vmatprep.subr.mxu0 0.0
  %98 = vmatpush2.msra.mxu0 0.0
  %99 = vmatprep.subr.mxu0 0.0
  %100 = vmatpush2.msra.mxu0 0.0
  %101 = vmatprep.subr.mxu0 0.0
  %102 = vmatpush2.msra.mxu0 0.0
  %103 = vmatprep.mubr.f32.mxu0 0.0
  %104 = vmatmul.mubr.f32.gmra.mxu0 %v37
  %v105 = vpop.f32.mrf.mxu0
  %v106 = vadd.f32 0.0, %v105
  %v107 = vpop.f32.mrf.mxu0
  %108 = vdwg.mxu0
  %v109 = vadd.f32 %v30, %v106
  %v110 = vxor.u32 %v109, 2147483648
  %v111 = vmul.f32 %v110, 1.442695
  %v112 = vpow.pop %v111
  %v113 = vadd.f32 %v112, 1.0
  %v114 = vrcp.pop %v113
  %v115 = vmul.f32 1.0, %v114
  %v116 = vtanh.pop %v109
  %v117 = vmul.f32 %v115, 0.0
  %119 = vrot.lane.b32.xlu0 %v116, 64
  %v120 = vpop.permute.xlu0 %119
  %v122 = vmul.f32 %v115, %v120
  %124 = vrot.lane.b32.xlu0 %v122, 32
  %v125 = vpop.permute.xlu0 %124
  %v127 = vadd.f32 %v117, %v125
  %v128 = vtanh.pop %v127
  %130 = vrot.lane.b32.xlu0 %v128, 64
  %v131 = vpop.permute.xlu0 %130
  %v133 = vmul.f32 %v115, %v131
  %134 = vmatprep.subr.mxu0 0.0
  %135 = vmatpush1.msra.mxu0 0.0
  %136 = vmatprep.subr.mxu0 0.0
  %137 = vmatpush1.msra.mxu0 0.0
  %138 = vmatprep.subr.mxu0 0.0
  %139 = vmatpush1.msra.mxu0 0.0
  %140 = vmatprep.subr.mxu0 0.0
  %141 = vmatpush1.msra.mxu0 0.0
  %142 = vmatprep.subr.mxu0 0.0
  %143 = vmatpush1.msra.mxu0 0.0
  %144 = vmatprep.subr.mxu0 0.0
  %145 = vmatpush1.msra.mxu0 0.0
  %146 = vmatprep.subr.mxu0 0.0
  %147 = vmatpush1.msra.mxu0 0.0
  %148 = vmatprep.subr.mxu0 0.0
  %149 = vmatpush1.msra.mxu0 0.0
  %150 = vmatprep.subr.mxu0 0.0
  %151 = vmatpush1.msra.mxu0 0.0
  %152 = vmatprep.subr.mxu0 0.0
  %153 = vmatpush1.msra.mxu0 0.0
  %154 = vmatprep.subr.mxu0 0.0
  %155 = vmatpush1.msra.mxu0 0.0
  %156 = vmatprep.subr.mxu0 0.0
  %157 = vmatpush1.msra.mxu0 0.0
  %158 = vmatprep.subr.mxu0 0.0
  %159 = vmatpush1.msra.mxu0 %v29
  %160 = vmatprep.subr.mxu0 0.0
  %161 = vmatpush1.msra.mxu0 %v28
  %162 = vmatprep.subr.mxu0 0.0
  %163 = vmatpush1.msra.mxu0 %v27
  %164 = vmatprep.subr.mxu0 0.0
  %165 = vmatpush1.msra.mxu0 %v26
  %166 = vmatprep.subr.mxu0 0.0
  %167 = vmatpush2.msra.mxu0 0.0
  %168 = vmatprep.subr.mxu0 0.0
  %169 = vmatpush2.msra.mxu0 0.0
  %170 = vmatprep.subr.mxu0 0.0
  %171 = vmatpush2.msra.mxu0 0.0
  %172 = vmatprep.subr.mxu0 0.0
  %173 = vmatpush2.msra.mxu0 0.0
  %174 = vmatprep.subr.mxu0 0.0
  %175 = vmatpush2.msra.mxu0 0.0
  %176 = vmatprep.subr.mxu0 0.0
  %177 = vmatpush2.msra.mxu0 0.0
  %178 = vmatprep.subr.mxu0 0.0
  %179 = vmatpush2.msra.mxu0 0.0
  %180 = vmatprep.subr.mxu0 0.0
  %181 = vmatpush2.msra.mxu0 0.0
  %182 = vmatprep.subr.mxu0 0.0
  %183 = vmatpush2.msra.mxu0 0.0
  %184 = vmatprep.subr.mxu0 0.0
  %185 = vmatpush2.msra.mxu0 0.0
  %186 = vmatprep.subr.mxu0 0.0
  %187 = vmatpush2.msra.mxu0 0.0
  %188 = vmatprep.subr.mxu0 0.0
  %189 = vmatpush2.msra.mxu0 0.0
  %190 = vmatprep.subr.mxu0 0.0
  %191 = vmatpush2.msra.mxu0 0.0
  %192 = vmatprep.subr.mxu0 0.0
  %193 = vmatpush2.msra.mxu0 0.0
  %194 = vmatprep.subr.mxu0 0.0
  %195 = vmatpush2.msra.mxu0 0.0
  %196 = vmatprep.subr.mxu0 0.0
  %197 = vmatpush2.msra.mxu0 0.0
  %198 = vmatprep.mubr.f32.mxu0 0.0
  %199 = vmatmul.mubr.f32.gmra.mxu0 %v37
  %v200 = vpop.f32.mrf.mxu0
  %v201 = vadd.f32 0.0, %v200
  %v202 = vpop.f32.mrf.mxu0
  %203 = vdwg.mxu0
  %v204 = vadd.f32 %v34, %v201
  %v205 = vxor.u32 %v204, 2147483648
  %v206 = vmul.f32 %v205, 1.442695
  %v207 = vpow.pop %v206
  %v208 = vadd.f32 %v207, 1.0
  %v209 = vrcp.pop %v208
  %v210 = vmul.f32 1.0, %v209
  %v211 = vtanh.pop %v204
  %v212 = vmul.f32 %v210, 0.0
  %214 = vrot.lane.b32.xlu0 %v211, 64
  %v215 = vpop.permute.xlu0 %214
  %v217 = vmul.f32 %v210, %v215
  %219 = vrot.lane.b32.xlu0 %v217, 32
  %v220 = vpop.permute.xlu0 %219
  %v222 = vadd.f32 %v212, %v220
  %v223 = vtanh.pop %v222
  %225 = vrot.lane.b32.xlu0 %v223, 64
  %v226 = vpop.permute.xlu0 %225
  %v228 = vmul.f32 %v210, %v226
  %s229 = scalar_lea.vmem %s0, 16
  %v230 = vld [vmem:[%s229] sm:$0xff]
  %v231 = vld [vmem:[%s229 + $0x8] sm:$0xff]
  %s232 = scalar_lea.vmem %s0, 96
  %v233 = vld [vmem:[%s232] sm:$0xff]
  %v234 = vld [vmem:[%s232 + $0x8] sm:$0xff]
  %236 = vrot.lane.b32.xlu0 %v133, 32
  %v237 = vpop.permute.xlu0 %236
  %v238 = vsel %vm35, %v237, 0
  %240 = vmatprep.subr.mxu0 0.0
  %241 = vmatpush1.msra.mxu0 0.0
  %242 = vmatprep.subr.mxu0 0.0
  %243 = vmatpush1.msra.mxu0 0.0
  %244 = vmatprep.subr.mxu0 0.0
  %245 = vmatpush1.msra.mxu0 0.0
  %246 = vmatprep.subr.mxu0 0.0
  %247 = vmatpush1.msra.mxu0 0.0
  %248 = vmatprep.subr.mxu0 0.0
  %249 = vmatpush1.msra.mxu0 0.0
  %250 = vmatprep.subr.mxu0 0.0
  %251 = vmatpush1.msra.mxu0 0.0
  %252 = vmatprep.subr.mxu0 0.0
  %253 = vmatpush1.msra.mxu0 0.0
  %254 = vmatprep.subr.mxu0 0.0
  %255 = vmatpush1.msra.mxu0 0.0
  %256 = vmatprep.subr.mxu0 0.0
  %257 = vmatpush1.msra.mxu0 0.0
  %258 = vmatprep.subr.mxu0 0.0
  %259 = vmatpush1.msra.mxu0 0.0
  %260 = vmatprep.subr.mxu0 0.0
  %261 = vmatpush1.msra.mxu0 0.0
  %262 = vmatprep.subr.mxu0 0.0
  %263 = vmatpush1.msra.mxu0 0.0
  %264 = vmatprep.subr.mxu0 0.0
  %265 = vmatpush1.msra.mxu0 %v25
  %266 = vmatprep.subr.mxu0 0.0
  %267 = vmatpush1.msra.mxu0 %v24
  %268 = vmatprep.subr.mxu0 0.0
  %269 = vmatpush1.msra.mxu0 %v23
  %270 = vmatprep.subr.mxu0 0.0
  %271 = vmatpush1.msra.mxu0 %v22
  %272 = vmatprep.subr.mxu0 0.0
  %273 = vmatpush2.msra.mxu0 0.0
  %274 = vmatprep.subr.mxu0 0.0
  %275 = vmatpush2.msra.mxu0 0.0
  %276 = vmatprep.subr.mxu0 0.0
  %277 = vmatpush2.msra.mxu0 0.0
  %278 = vmatprep.subr.mxu0 0.0
  %279 = vmatpush2.msra.mxu0 0.0
  %280 = vmatprep.subr.mxu0 0.0
  %281 = vmatpush2.msra.mxu0 0.0
  %282 = vmatprep.subr.mxu0 0.0
  %283 = vmatpush2.msra.mxu0 0.0
  %284 = vmatprep.subr.mxu0 0.0
  %285 = vmatpush2.msra.mxu0 0.0
  %286 = vmatprep.subr.mxu0 0.0
  %287 = vmatpush2.msra.mxu0 0.0
  %288 = vmatprep.subr.mxu0 0.0
  %289 = vmatpush2.msra.mxu0 0.0
  %290 = vmatprep.subr.mxu0 0.0
  %291 = vmatpush2.msra.mxu0 0.0
  %292 = vmatprep.subr.mxu0 0.0
  %293 = vmatpush2.msra.mxu0 0.0
  %294 = vmatprep.subr.mxu0 0.0
  %295 = vmatpush2.msra.mxu0 0.0
  %296 = vmatprep.subr.mxu0 0.0
  %297 = vmatpush2.msra.mxu0 0.0
  %298 = vmatprep.subr.mxu0 0.0
  %299 = vmatpush2.msra.mxu0 0.0
  %300 = vmatprep.subr.mxu0 0.0
  %301 = vmatpush2.msra.mxu0 0.0
  %302 = vmatprep.subr.mxu0 0.0
  %303 = vmatpush2.msra.mxu0 0.0
  %304 = vmatprep.mubr.f32.mxu0 0.0
  %305 = vmatmul.mubr.f32.gmra.mxu0 %v238
  %v306 = vpop.f32.mrf.mxu0
  %v307 = vadd.f32 0.0, %v306
  %v308 = vpop.f32.mrf.mxu0
  %309 = vdwg.mxu0
  %v310 = vadd.f32 %v230, %v307
  %v311 = vxor.u32 %v310, 2147483648
  %v312 = vmul.f32 %v311, 1.442695
  %v313 = vpow.pop %v312
  %v314 = vadd.f32 %v313, 1.0
  %v315 = vrcp.pop %v314
  %v316 = vmul.f32 1.0, %v315
  %v317 = vtanh.pop %v310
  %v318 = vmul.f32 %v316, %v127
  %320 = vrot.lane.b32.xlu0 %v317, 64
  %v321 = vpop.permute.xlu0 %320
  %v323 = vmul.f32 %v316, %v321
  %325 = vrot.lane.b32.xlu0 %v323, 32
  %v326 = vpop.permute.xlu0 %325
  %v328 = vadd.f32 %v318, %v326
  %v329 = vtanh.pop %v328
  %331 = vrot.lane.b32.xlu0 %v329, 64
  %v332 = vpop.permute.xlu0 %331
  %v334 = vmul.f32 %v316, %v332
  %336 = vrot.lane.b32.xlu0 %v228, 32
  %v337 = vpop.permute.xlu0 %336
  %v338 = vsel %vm35, %v337, 0
  %340 = vmatprep.subr.mxu0 0.0
  %341 = vmatpush1.msra.mxu0 0.0
  %342 = vmatprep.subr.mxu0 0.0
  %343 = vmatpush1.msra.mxu0 0.0
  %344 = vmatprep.subr.mxu0 0.0
  %345 = vmatpush1.msra.mxu0 0.0
  %346 = vmatprep.subr.mxu0 0.0
  %347 = vmatpush1.msra.mxu0 0.0
  %348 = vmatprep.subr.mxu0 0.0
  %349 = vmatpush1.msra.mxu0 0.0
  %350 = vmatprep.subr.mxu0 0.0
  %351 = vmatpush1.msra.mxu0 0.0
  %352 = vmatprep.subr.mxu0 0.0
  %353 = vmatpush1.msra.mxu0 0.0
  %354 = vmatprep.subr.mxu0 0.0
  %355 = vmatpush1.msra.mxu0 0.0
  %356 = vmatprep.subr.mxu0 0.0
  %357 = vmatpush1.msra.mxu0 0.0
  %358 = vmatprep.subr.mxu0 0.0
  %359 = vmatpush1.msra.mxu0 0.0
  %360 = vmatprep.subr.mxu0 0.0
  %361 = vmatpush1.msra.mxu0 0.0
  %362 = vmatprep.subr.mxu0 0.0
  %363 = vmatpush1.msra.mxu0 0.0
  %364 = vmatprep.subr.mxu0 0.0
  %365 = vmatpush1.msra.mxu0 %v29
  %366 = vmatprep.subr.mxu0 0.0
  %367 = vmatpush1.msra.mxu0 %v28
  %368 = vmatprep.subr.mxu0 0.0
  %369 = vmatpush1.msra.mxu0 %v27
  %370 = vmatprep.subr.mxu0 0.0
  %371 = vmatpush1.msra.mxu0 %v26
  %372 = vmatprep.subr.mxu0 0.0
  %373 = vmatpush2.msra.mxu0 0.0
  %374 = vmatprep.subr.mxu0 0.0
  %375 = vmatpush2.msra.mxu0 0.0
  %376 = vmatprep.subr.mxu0 0.0
  %377 = vmatpush2.msra.mxu0 0.0
  %378 = vmatprep.subr.mxu0 0.0
  %379 = vmatpush2.msra.mxu0 0.0
  %380 = vmatprep.subr.mxu0 0.0
  %381 = vmatpush2.msra.mxu0 0.0
  %382 = vmatprep.subr.mxu0 0.0
  %383 = vmatpush2.msra.mxu0 0.0
  %384 = vmatprep.subr.mxu0 0.0
  %385 = vmatpush2.msra.mxu0 0.0
  %386 = vmatprep.subr.mxu0 0.0
  %387 = vmatpush2.msra.mxu0 0.0
  %388 = vmatprep.subr.mxu0 0.0
  %389 = vmatpush2.msra.mxu0 0.0
  %390 = vmatprep.subr.mxu0 0.0
  %391 = vmatpush2.msra.mxu0 0.0
  %392 = vmatprep.subr.mxu0 0.0
  %393 = vmatpush2.msra.mxu0 0.0
  %394 = vmatprep.subr.mxu0 0.0
  %395 = vmatpush2.msra.mxu0 0.0
  %396 = vmatprep.subr.mxu0 0.0
  %397 = vmatpush2.msra.mxu0 0.0
  %398 = vmatprep.subr.mxu0 0.0
  %399 = vmatpush2.msra.mxu0 0.0
  %400 = vmatprep.subr.mxu0 0.0
  %401 = vmatpush2.msra.mxu0 0.0
  %402 = vmatprep.subr.mxu0 0.0
  %403 = vmatpush2.msra.mxu0 0.0
  %404 = vmatprep.mubr.f32.mxu0 0.0
  %405 = vmatmul.mubr.f32.gmra.mxu0 %v338
  %v406 = vpop.f32.mrf.mxu0
  %v407 = vadd.f32 0.0, %v406
  %v408 = vpop.f32.mrf.mxu0
  %409 = vdwg.mxu0
  %v410 = vadd.f32 %v234, %v407
  %v411 = vxor.u32 %v410, 2147483648
  %v412 = vmul.f32 %v411, 1.442695
  %v413 = vpow.pop %v412
  %v414 = vadd.f32 %v413, 1.0
  %v415 = vrcp.pop %v414
  %v416 = vmul.f32 1.0, %v415
  %v417 = vtanh.pop %v410
  %v418 = vmul.f32 %v416, %v222
  %420 = vrot.lane.b32.xlu0 %v417, 64
  %v421 = vpop.permute.xlu0 %420
  %v423 = vmul.f32 %v416, %v421
  %425 = vrot.lane.b32.xlu0 %v423, 32
  %v426 = vpop.permute.xlu0 %425
  %v428 = vadd.f32 %v418, %v426
  %v429 = vtanh.pop %v428
  %431 = vrot.lane.b32.xlu0 %v429, 64
  %v432 = vpop.permute.xlu0 %431
  %v434 = vmul.f32 %v416, %v432
  %s435 = scalar_lea.vmem %s0, 32
  %v436 = vld [vmem:[%s435] sm:$0xff]
  %v437 = vld [vmem:[%s435 + $0x8] sm:$0xff]
  %s438 = scalar_lea.vmem %s0, 80
  %v439 = vld [vmem:[%s438] sm:$0xff]
  %v440 = vld [vmem:[%s438 + $0x8] sm:$0xff]
  %442 = vrot.lane.b32.xlu0 %v334, 32
  %v443 = vpop.permute.xlu0 %442
  %v444 = vsel %vm35, %v443, 0
  %446 = vmatprep.subr.mxu0 0.0
  %447 = vmatpush1.msra.mxu0 0.0
  %448 = vmatprep.subr.mxu0 0.0
  %449 = vmatpush1.msra.mxu0 0.0
  %450 = vmatprep.subr.mxu0 0.0
  %451 = vmatpush1.msra.mxu0 0.0
  %452 = vmatprep.subr.mxu0 0.0
  %453 = vmatpush1.msra.mxu0 0.0
  %454 = vmatprep.subr.mxu0 0.0
  %455 = vmatpush1.msra.mxu0 0.0
  %456 = vmatprep.subr.mxu0 0.0
  %457 = vmatpush1.msra.mxu0 0.0
  %458 = vmatprep.subr.mxu0 0.0
  %459 = vmatpush1.msra.mxu0 0.0
  %460 = vmatprep.subr.mxu0 0.0
  %461 = vmatpush1.msra.mxu0 0.0
  %462 = vmatprep.subr.mxu0 0.0
  %463 = vmatpush1.msra.mxu0 0.0
  %464 = vmatprep.subr.mxu0 0.0
  %465 = vmatpush1.msra.mxu0 0.0
  %466 = vmatprep.subr.mxu0 0.0
  %467 = vmatpush1.msra.mxu0 0.0
  %468 = vmatprep.subr.mxu0 0.0
  %469 = vmatpush1.msra.mxu0 0.0
  %470 = vmatprep.subr.mxu0 0.0
  %471 = vmatpush1.msra.mxu0 %v25
  %472 = vmatprep.subr.mxu0 0.0
  %473 = vmatpush1.msra.mxu0 %v24
  %474 = vmatprep.subr.mxu0 0.0
  %475 = vmatpush1.msra.mxu0 %v23
  %476 = vmatprep.subr.mxu0 0.0
  %477 = vmatpush1.msra.mxu0 %v22
  %478 = vmatprep.subr.mxu0 0.0
  %479 = vmatpush2.msra.mxu0 0.0
  %480 = vmatprep.subr.mxu0 0.0
  %481 = vmatpush2.msra.mxu0 0.0
  %482 = vmatprep.subr.mxu0 0.0
  %483 = vmatpush2.msra.mxu0 0.0
  %484 = vmatprep.subr.mxu0 0.0
  %485 = vmatpush2.msra.mxu0 0.0
  %486 = vmatprep.subr.mxu0 0.0
  %487 = vmatpush2.msra.mxu0 0.0
  %488 = vmatprep.subr.mxu0 0.0
  %489 = vmatpush2.msra.mxu0 0.0
  %490 = vmatprep.subr.mxu0 0.0
  %491 = vmatpush2.msra.mxu0 0.0
  %492 = vmatprep.subr.mxu0 0.0
  %493 = vmatpush2.msra.mxu0 0.0
  %494 = vmatprep.subr.mxu0 0.0
  %495 = vmatpush2.msra.mxu0 0.0
  %496 = vmatprep.subr.mxu0 0.0
  %497 = vmatpush2.msra.mxu0 0.0
  %498 = vmatprep.subr.mxu0 0.0
  %499 = vmatpush2.msra.mxu0 0.0
  %500 = vmatprep.subr.mxu0 0.0
  %501 = vmatpush2.msra.mxu0 0.0
  %502 = vmatprep.subr.mxu0 0.0
  %503 = vmatpush2.msra.mxu0 0.0
  %504 = vmatprep.subr.mxu0 0.0
  %505 = vmatpush2.msra.mxu0 0.0
  %506 = vmatprep.subr.mxu0 0.0
  %507 = vmatpush2.msra.mxu0 0.0
  %508 = vmatprep.subr.mxu0 0.0
  %509 = vmatpush2.msra.mxu0 0.0
  %510 = vmatprep.mubr.f32.mxu0 0.0
  %511 = vmatmul.mubr.f32.gmra.mxu0 %v444
  %v512 = vpop.f32.mrf.mxu0
  %v513 = vadd.f32 0.0, %v512
  %v514 = vpop.f32.mrf.mxu0
  %515 = vdwg.mxu0
  %v516 = vadd.f32 %v436, %v513
  %v517 = vxor.u32 %v516, 2147483648
  %v518 = vmul.f32 %v517, 1.442695
  %v519 = vpow.pop %v518
  %v520 = vadd.f32 %v519, 1.0
  %v521 = vrcp.pop %v520
  %v522 = vmul.f32 1.0, %v521
  %v523 = vtanh.pop %v516
  %v524 = vmul.f32 %v522, %v328
  %526 = vrot.lane.b32.xlu0 %v523, 64
  %v527 = vpop.permute.xlu0 %526
  %v529 = vmul.f32 %v522, %v527
  %531 = vrot.lane.b32.xlu0 %v529, 32
  %v532 = vpop.permute.xlu0 %531
  %v534 = vadd.f32 %v524, %v532
  %v535 = vtanh.pop %v534
  %537 = vrot.lane.b32.xlu0 %v535, 64
  %v538 = vpop.permute.xlu0 %537
  %v540 = vmul.f32 %v522, %v538
  %542 = vrot.lane.b32.xlu0 %v434, 32
  %v543 = vpop.permute.xlu0 %542
  %v544 = vsel %vm35, %v543, 0
  %546 = vmatprep.subr.mxu0 0.0
  %547 = vmatpush1.msra.mxu0 0.0
  %548 = vmatprep.subr.mxu0 0.0
  %549 = vmatpush1.msra.mxu0 0.0
  %550 = vmatprep.subr.mxu0 0.0
  %551 = vmatpush1.msra.mxu0 0.0
  %552 = vmatprep.subr.mxu0 0.0
  %553 = vmatpush1.msra.mxu0 0.0
  %554 = vmatprep.subr.mxu0 0.0
  %555 = vmatpush1.msra.mxu0 0.0
  %556 = vmatprep.subr.mxu0 0.0
  %557 = vmatpush1.msra.mxu0 0.0
  %558 = vmatprep.subr.mxu0 0.0
  %559 = vmatpush1.msra.mxu0 0.0
  %560 = vmatprep.subr.mxu0 0.0
  %561 = vmatpush1.msra.mxu0 0.0
  %562 = vmatprep.subr.mxu0 0.0
  %563 = vmatpush1.msra.mxu0 0.0
  %564 = vmatprep.subr.mxu0 0.0
  %565 = vmatpush1.msra.mxu0 0.0
  %566 = vmatprep.subr.mxu0 0.0
  %567 = vmatpush1.msra.mxu0 0.0
  %568 = vmatprep.subr.mxu0 0.0
  %569 = vmatpush1.msra.mxu0 0.0
  %570 = vmatprep.subr.mxu0 0.0
  %571 = vmatpush1.msra.mxu0 %v29
  %572 = vmatprep.subr.mxu0 0.0
  %573 = vmatpush1.msra.mxu0 %v28
  %574 = vmatprep.subr.mxu0 0.0
  %575 = vmatpush1.msra.mxu0 %v27
  %576 = vmatprep.subr.mxu0 0.0
  %577 = vmatpush1.msra.mxu0 %v26
  %578 = vmatprep.subr.mxu0 0.0
  %579 = vmatpush2.msra.mxu0 0.0
  %580 = vmatprep.subr.mxu0 0.0
  %581 = vmatpush2.msra.mxu0 0.0
  %582 = vmatprep.subr.mxu0 0.0
  %583 = vmatpush2.msra.mxu0 0.0
  %584 = vmatprep.subr.mxu0 0.0
  %585 = vmatpush2.msra.mxu0 0.0
  %586 = vmatprep.subr.mxu0 0.0
  %587 = vmatpush2.msra.mxu0 0.0
  %588 = vmatprep.subr.mxu0 0.0
  %589 = vmatpush2.msra.mxu0 0.0
  %590 = vmatprep.subr.mxu0 0.0
  %591 = vmatpush2.msra.mxu0 0.0
  %592 = vmatprep.subr.mxu0 0.0
  %593 = vmatpush2.msra.mxu0 0.0
  %594 = vmatprep.subr.mxu0 0.0
  %595 = vmatpush2.msra.mxu0 0.0
  %596 = vmatprep.subr.mxu0 0.0
  %597 = vmatpush2.msra.mxu0 0.0
  %598 = vmatprep.subr.mxu0 0.0
  %599 = vmatpush2.msra.mxu0 0.0
  %600 = vmatprep.subr.mxu0 0.0
  %601 = vmatpush2.msra.mxu0 0.0
  %602 = vmatprep.subr.mxu0 0.0
  %603 = vmatpush2.msra.mxu0 0.0
  %604 = vmatprep.subr.mxu0 0.0
  %605 = vmatpush2.msra.mxu0 0.0
  %606 = vmatprep.subr.mxu0 0.0
  %607 = vmatpush2.msra.mxu0 0.0
  %608 = vmatprep.subr.mxu0 0.0
  %609 = vmatpush2.msra.mxu0 0.0
  %610 = vmatprep.mubr.f32.mxu0 0.0
  %611 = vmatmul.mubr.f32.gmra.mxu0 %v544
  %v612 = vpop.f32.mrf.mxu0
  %v613 = vadd.f32 0.0, %v612
  %v614 = vpop.f32.mrf.mxu0
  %615 = vdwg.mxu0
  %v616 = vadd.f32 %v440, %v613
  %v617 = vxor.u32 %v616, 2147483648
  %v618 = vmul.f32 %v617, 1.442695
  %v619 = vpow.pop %v618
  %v620 = vadd.f32 %v619, 1.0
  %v621 = vrcp.pop %v620
  %v622 = vmul.f32 1.0, %v621
  %v623 = vtanh.pop %v616
  %v624 = vmul.f32 %v622, %v428
  %626 = vrot.lane.b32.xlu0 %v623, 64
  %v627 = vpop.permute.xlu0 %626
  %v629 = vmul.f32 %v622, %v627
  %631 = vrot.lane.b32.xlu0 %v629, 32
  %v632 = vpop.permute.xlu0 %631
  %v634 = vadd.f32 %v624, %v632
  %v635 = vtanh.pop %v634
  %637 = vrot.lane.b32.xlu0 %v635, 64
  %v638 = vpop.permute.xlu0 %637
  %v640 = vmul.f32 %v622, %v638
  %s641 = scalar_lea.vmem %s0, 48
  %v642 = vld [vmem:[%s641] sm:$0xff]
  %v643 = vld [vmem:[%s641 + $0x8] sm:$0xff]
  %s644 = scalar_lea.vmem %s0, 64
  %v645 = vld [vmem:[%s644] sm:$0xff]
  %v646 = vld [vmem:[%s644 + $0x8] sm:$0xff]
  %648 = vrot.lane.b32.xlu0 %v540, 32
  %v649 = vpop.permute.xlu0 %648
  %v650 = vsel %vm35, %v649, 0
  %652 = vmatprep.subr.mxu0 0.0
  %653 = vmatpush1.msra.mxu0 0.0
  %654 = vmatprep.subr.mxu0 0.0
  %655 = vmatpush1.msra.mxu0 0.0
  %656 = vmatprep.subr.mxu0 0.0
  %657 = vmatpush1.msra.mxu0 0.0
  %658 = vmatprep.subr.mxu0 0.0
  %659 = vmatpush1.msra.mxu0 0.0
  %660 = vmatprep.subr.mxu0 0.0
  %661 = vmatpush1.msra.mxu0 0.0
  %662 = vmatprep.subr.mxu0 0.0
  %663 = vmatpush1.msra.mxu0 0.0
  %664 = vmatprep.subr.mxu0 0.0
  %665 = vmatpush1.msra.mxu0 0.0
  %666 = vmatprep.subr.mxu0 0.0
  %667 = vmatpush1.msra.mxu0 0.0
  %668 = vmatprep.subr.mxu0 0.0
  %669 = vmatpush1.msra.mxu0 0.0
  %670 = vmatprep.subr.mxu0 0.0
  %671 = vmatpush1.msra.mxu0 0.0
  %672 = vmatprep.subr.mxu0 0.0
  %673 = vmatpush1.msra.mxu0 0.0
  %674 = vmatprep.subr.mxu0 0.0
  %675 = vmatpush1.msra.mxu0 0.0
  %676 = vmatprep.subr.mxu0 0.0
  %677 = vmatpush1.msra.mxu0 %v25
  %678 = vmatprep.subr.mxu0 0.0
  %679 = vmatpush1.msra.mxu0 %v24
  %680 = vmatprep.subr.mxu0 0.0
  %681 = vmatpush1.msra.mxu0 %v23
  %682 = vmatprep.subr.mxu0 0.0
  %683 = vmatpush1.msra.mxu0 %v22
  %684 = vmatprep.subr.mxu0 0.0
  %685 = vmatpush2.msra.mxu0 0.0
  %686 = vmatprep.subr.mxu0 0.0
  %687 = vmatpush2.msra.mxu0 0.0
  %688 = vmatprep.subr.mxu0 0.0
  %689 = vmatpush2.msra.mxu0 0.0
  %690 = vmatprep.subr.mxu0 0.0
  %691 = vmatpush2.msra.mxu0 0.0
  %692 = vmatprep.subr.mxu0 0.0
  %693 = vmatpush2.msra.mxu0 0.0
  %694 = vmatprep.subr.mxu0 0.0
  %695 = vmatpush2.msra.mxu0 0.0
  %696 = vmatprep.subr.mxu0 0.0
  %697 = vmatpush2.msra.mxu0 0.0
  %698 = vmatprep.subr.mxu0 0.0
  %699 = vmatpush2.msra.mxu0 0.0
  %700 = vmatprep.subr.mxu0 0.0
  %701 = vmatpush2.msra.mxu0 0.0
  %702 = vmatprep.subr.mxu0 0.0
  %703 = vmatpush2.msra.mxu0 0.0
  %704 = vmatprep.subr.mxu0 0.0
  %705 = vmatpush2.msra.mxu0 0.0
  %706 = vmatprep.subr.mxu0 0.0
  %707 = vmatpush2.msra.mxu0 0.0
  %708 = vmatprep.subr.mxu0 0.0
  %709 = vmatpush2.msra.mxu0 0.0
  %710 = vmatprep.subr.mxu0 0.0
  %711 = vmatpush2.msra.mxu0 0.0
  %712 = vmatprep.subr.mxu0 0.0
  %713 = vmatpush2.msra.mxu0 0.0
  %714 = vmatprep.subr.mxu0 0.0
  %715 = vmatpush2.msra.mxu0 0.0
  %716 = vmatprep.mubr.f32.mxu0 0.0
  %717 = vmatmul.mubr.f32.gmra.mxu0 %v650
  %v718 = vpop.f32.mrf.mxu0
  %v719 = vadd.f32 0.0, %v718
  %v720 = vpop.f32.mrf.mxu0
  %721 = vdwg.mxu0
  %v722 = vadd.f32 %v642, %v719
  %v723 = vxor.u32 %v722, 2147483648
  %v724 = vmul.f32 %v723, 1.442695
  %v725 = vpow.pop %v724
  %v726 = vadd.f32 %v725, 1.0
  %v727 = vrcp.pop %v726
  %v728 = vmul.f32 1.0, %v727
  %v729 = vtanh.pop %v722
  %v730 = vmul.f32 %v728, %v534
  %732 = vrot.lane.b32.xlu0 %v729, 64
  %v733 = vpop.permute.xlu0 %732
  %v735 = vmul.f32 %v728, %v733
  %737 = vrot.lane.b32.xlu0 %v735, 32
  %v738 = vpop.permute.xlu0 %737
  %v740 = vadd.f32 %v730, %v738
  %v741 = vtanh.pop %v740
  %743 = vrot.lane.b32.xlu0 %v741, 64
  %v744 = vpop.permute.xlu0 %743
  %v746 = vmul.f32 %v728, %v744
  %748 = vrot.lane.b32.xlu0 %v640, 32
  %v749 = vpop.permute.xlu0 %748
  %v750 = vsel %vm35, %v749, 0
  %752 = vmatprep.subr.mxu0 0.0
  %753 = vmatpush1.msra.mxu0 0.0
  %754 = vmatprep.subr.mxu0 0.0
  %755 = vmatpush1.msra.mxu0 0.0
  %756 = vmatprep.subr.mxu0 0.0
  %757 = vmatpush1.msra.mxu0 0.0
  %758 = vmatprep.subr.mxu0 0.0
  %759 = vmatpush1.msra.mxu0 0.0
  %760 = vmatprep.subr.mxu0 0.0
  %761 = vmatpush1.msra.mxu0 0.0
  %762 = vmatprep.subr.mxu0 0.0
  %763 = vmatpush1.msra.mxu0 0.0
  %764 = vmatprep.subr.mxu0 0.0
  %765 = vmatpush1.msra.mxu0 0.0
  %766 = vmatprep.subr.mxu0 0.0
  %767 = vmatpush1.msra.mxu0 0.0
  %768 = vmatprep.subr.mxu0 0.0
  %769 = vmatpush1.msra.mxu0 0.0
  %770 = vmatprep.subr.mxu0 0.0
  %771 = vmatpush1.msra.mxu0 0.0
  %772 = vmatprep.subr.mxu0 0.0
  %773 = vmatpush1.msra.mxu0 0.0
  %774 = vmatprep.subr.mxu0 0.0
  %775 = vmatpush1.msra.mxu0 0.0
  %776 = vmatprep.subr.mxu0 0.0
  %777 = vmatpush1.msra.mxu0 %v29
  %778 = vmatprep.subr.mxu0 0.0
  %779 = vmatpush1.msra.mxu0 %v28
  %780 = vmatprep.subr.mxu0 0.0
  %781 = vmatpush1.msra.mxu0 %v27
  %782 = vmatprep.subr.mxu0 0.0
  %783 = vmatpush1.msra.mxu0 %v26
  %784 = vmatprep.subr.mxu0 0.0
  %785 = vmatpush2.msra.mxu0 0.0
  %786 = vmatprep.subr.mxu0 0.0
  %787 = vmatpush2.msra.mxu0 0.0
  %788 = vmatprep.subr.mxu0 0.0
  %789 = vmatpush2.msra.mxu0 0.0
  %790 = vmatprep.subr.mxu0 0.0
  %791 = vmatpush2.msra.mxu0 0.0
  %792 = vmatprep.subr.mxu0 0.0
  %793 = vmatpush2.msra.mxu0 0.0
  %794 = vmatprep.subr.mxu0 0.0
  %795 = vmatpush2.msra.mxu0 0.0
  %796 = vmatprep.subr.mxu0 0.0
  %797 = vmatpush2.msra.mxu0 0.0
  %798 = vmatprep.subr.mxu0 0.0
  %799 = vmatpush2.msra.mxu0 0.0
  %800 = vmatprep.subr.mxu0 0.0
  %801 = vmatpush2.msra.mxu0 0.0
  %802 = vmatprep.subr.mxu0 0.0
  %803 = vmatpush2.msra.mxu0 0.0
  %804 = vmatprep.subr.mxu0 0.0
  %805 = vmatpush2.msra.mxu0 0.0
  %806 = vmatprep.subr.mxu0 0.0
  %807 = vmatpush2.msra.mxu0 0.0
  %808 = vmatprep.subr.mxu0 0.0
  %809 = vmatpush2.msra.mxu0 0.0
  %810 = vmatprep.subr.mxu0 0.0
  %811 = vmatpush2.msra.mxu0 0.0
  %812 = vmatprep.subr.mxu0 0.0
  %813 = vmatpush2.msra.mxu0 0.0
  %814 = vmatprep.subr.mxu0 0.0
  %815 = vmatpush2.msra.mxu0 0.0
  %816 = vmatprep.mubr.f32.mxu0 0.0
  %817 = vmatmul.mubr.f32.gmra.mxu0 %v750
  %v818 = vpop.f32.mrf.mxu0
  %v819 = vadd.f32 0.0, %v818
  %v820 = vpop.f32.mrf.mxu0
  %821 = vdwg.mxu0
  %v822 = vadd.f32 %v646, %v819
  %v823 = vxor.u32 %v822, 2147483648
  %v824 = vmul.f32 %v823, 1.442695
  %v825 = vpow.pop %v824
  %v826 = vadd.f32 %v825, 1.0
  %v827 = vrcp.pop %v826
  %v828 = vmul.f32 1.0, %v827
  %v829 = vtanh.pop %v822
  %v830 = vmul.f32 %v828, %v634
  %832 = vrot.lane.b32.xlu0 %v829, 64
  %v833 = vpop.permute.xlu0 %832
  %v835 = vmul.f32 %v828, %v833
  %837 = vrot.lane.b32.xlu0 %v835, 32
  %v838 = vpop.permute.xlu0 %837
  %v840 = vadd.f32 %v830, %v838
  %v841 = vtanh.pop %v840
  %843 = vrot.lane.b32.xlu0 %v841, 64
  %v844 = vpop.permute.xlu0 %843
  %v846 = vmul.f32 %v828, %v844
  %848 = vrot.lane.b32.xlu0 %v746, 32
  %v849 = vpop.permute.xlu0 %848
  %v850 = vsel %vm35, %v849, 0
  %852 = vmatprep.subr.mxu0 0.0
  %853 = vmatpush1.msra.mxu0 0.0
  %854 = vmatprep.subr.mxu0 0.0
  %855 = vmatpush1.msra.mxu0 0.0
  %856 = vmatprep.subr.mxu0 0.0
  %857 = vmatpush1.msra.mxu0 0.0
  %858 = vmatprep.subr.mxu0 0.0
  %859 = vmatpush1.msra.mxu0 0.0
  %860 = vmatprep.subr.mxu0 0.0
  %861 = vmatpush1.msra.mxu0 0.0
  %862 = vmatprep.subr.mxu0 0.0
  %863 = vmatpush1.msra.mxu0 0.0
  %864 = vmatprep.subr.mxu0 0.0
  %865 = vmatpush1.msra.mxu0 0.0
  %866 = vmatprep.subr.mxu0 0.0
  %867 = vmatpush1.msra.mxu0 0.0
  %868 = vmatprep.subr.mxu0 0.0
  %869 = vmatpush1.msra.mxu0 0.0
  %870 = vmatprep.subr.mxu0 0.0
  %871 = vmatpush1.msra.mxu0 0.0
  %872 = vmatprep.subr.mxu0 0.0
  %873 = vmatpush1.msra.mxu0 0.0
  %874 = vmatprep.subr.mxu0 0.0
  %875 = vmatpush1.msra.mxu0 0.0
  %876 = vmatprep.subr.mxu0 0.0
  %877 = vmatpush1.msra.mxu0 %v25
  %878 = vmatprep.subr.mxu0 0.0
  %879 = vmatpush1.msra.mxu0 %v24
  %880 = vmatprep.subr.mxu0 0.0
  %881 = vmatpush1.msra.mxu0 %v23
  %882 = vmatprep.subr.mxu0 0.0
  %883 = vmatpush1.msra.mxu0 %v22
  %884 = vmatprep.subr.mxu0 0.0
  %885 = vmatpush2.msra.mxu0 0.0
  %886 = vmatprep.subr.mxu0 0.0
  %887 = vmatpush2.msra.mxu0 0.0
  %888 = vmatprep.subr.mxu0 0.0
  %889 = vmatpush2.msra.mxu0 0.0
  %890 = vmatprep.subr.mxu0 0.0
  %891 = vmatpush2.msra.mxu0 0.0
  %892 = vmatprep.subr.mxu0 0.0
  %893 = vmatpush2.msra.mxu0 0.0
  %894 = vmatprep.subr.mxu0 0.0
  %895 = vmatpush2.msra.mxu0 0.0
  %896 = vmatprep.subr.mxu0 0.0
  %897 = vmatpush2.msra.mxu0 0.0
  %898 = vmatprep.subr.mxu0 0.0
  %899 = vmatpush2.msra.mxu0 0.0
  %900 = vmatprep.subr.mxu0 0.0
  %901 = vmatpush2.msra.mxu0 0.0
  %902 = vmatprep.subr.mxu0 0.0
  %903 = vmatpush2.msra.mxu0 0.0
  %904 = vmatprep.subr.mxu0 0.0
  %905 = vmatpush2.msra.mxu0 0.0
  %906 = vmatprep.subr.mxu0 0.0
  %907 = vmatpush2.msra.mxu0 0.0
  %908 = vmatprep.subr.mxu0 0.0
  %909 = vmatpush2.msra.mxu0 0.0
  %910 = vmatprep.subr.mxu0 0.0
  %911 = vmatpush2.msra.mxu0 0.0
  %912 = vmatprep.subr.mxu0 0.0
  %913 = vmatpush2.msra.mxu0 0.0
  %914 = vmatprep.subr.mxu0 0.0
  %915 = vmatpush2.msra.mxu0 0.0
  %916 = vmatprep.mubr.f32.mxu0 0.0
  %917 = vmatmul.mubr.f32.gmra.mxu0 %v850
  %v918 = vpop.f32.mrf.mxu0
  %v919 = vadd.f32 0.0, %v918
  %v920 = vpop.f32.mrf.mxu0
  %921 = vdwg.mxu0
  %v922 = vadd.f32 %v645, %v919
  %v923 = vxor.u32 %v922, 2147483648
  %v924 = vmul.f32 %v923, 1.442695
  %v925 = vpow.pop %v924
  %v926 = vadd.f32 %v925, 1.0
  %v927 = vrcp.pop %v926
  %v928 = vmul.f32 1.0, %v927
  %v929 = vtanh.pop %v922
  %v930 = vmul.f32 %v928, %v740
  %932 = vrot.lane.b32.xlu0 %v929, 64
  %v933 = vpop.permute.xlu0 %932
  %v935 = vmul.f32 %v928, %v933
  %937 = vrot.lane.b32.xlu0 %v935, 32
  %v938 = vpop.permute.xlu0 %937
  %v940 = vadd.f32 %v930, %v938
  %v941 = vtanh.pop %v940
  %943 = vrot.lane.b32.xlu0 %v941, 64
  %v944 = vpop.permute.xlu0 %943
  %v946 = vmul.f32 %v928, %v944
  %948 = vrot.lane.b32.xlu0 %v846, 32
  %v949 = vpop.permute.xlu0 %948
  %v950 = vsel %vm35, %v949, 0
  %952 = vmatprep.subr.mxu0 0.0
  %953 = vmatpush1.msra.mxu0 0.0
  %954 = vmatprep.subr.mxu0 0.0
  %955 = vmatpush1.msra.mxu0 0.0
  %956 = vmatprep.subr.mxu0 0.0
  %957 = vmatpush1.msra.mxu0 0.0
  %958 = vmatprep.subr.mxu0 0.0
  %959 = vmatpush1.msra.mxu0 0.0
  %960 = vmatprep.subr.mxu0 0.0
  %961 = vmatpush1.msra.mxu0 0.0
  %962 = vmatprep.subr.mxu0 0.0
  %963 = vmatpush1.msra.mxu0 0.0
  %964 = vmatprep.subr.mxu0 0.0
  %965 = vmatpush1.msra.mxu0 0.0
  %966 = vmatprep.subr.mxu0 0.0
  %967 = vmatpush1.msra.mxu0 0.0
  %968 = vmatprep.subr.mxu0 0.0
  %969 = vmatpush1.msra.mxu0 0.0
  %970 = vmatprep.subr.mxu0 0.0
  %971 = vmatpush1.msra.mxu0 0.0
  %972 = vmatprep.subr.mxu0 0.0
  %973 = vmatpush1.msra.mxu0 0.0
  %974 = vmatprep.subr.mxu0 0.0
  %975 = vmatpush1.msra.mxu0 0.0
  %976 = vmatprep.subr.mxu0 0.0
  %977 = vmatpush1.msra.mxu0 %v29
  %978 = vmatprep.subr.mxu0 0.0
  %979 = vmatpush1.msra.mxu0 %v28
  %980 = vmatprep.subr.mxu0 0.0
  %981 = vmatpush1.msra.mxu0 %v27
  %982 = vmatprep.subr.mxu0 0.0
  %983 = vmatpush1.msra.mxu0 %v26
  %984 = vmatprep.subr.mxu0 0.0
  %985 = vmatpush2.msra.mxu0 0.0
  %986 = vmatprep.subr.mxu0 0.0
  %987 = vmatpush2.msra.mxu0 0.0
  %988 = vmatprep.subr.mxu0 0.0
  %989 = vmatpush2.msra.mxu0 0.0
  %990 = vmatprep.subr.mxu0 0.0
  %991 = vmatpush2.msra.mxu0 0.0
  %992 = vmatprep.subr.mxu0 0.0
  %993 = vmatpush2.msra.mxu0 0.0
  %994 = vmatprep.subr.mxu0 0.0
  %995 = vmatpush2.msra.mxu0 0.0
  %996 = vmatprep.subr.mxu0 0.0
  %997 = vmatpush2.msra.mxu0 0.0
  %998 = vmatprep.subr.mxu0 0.0
  %999 = vmatpush2.msra.mxu0 0.0
  %1000 = vmatprep.subr.mxu0 0.0
  %1001 = vmatpush2.msra.mxu0 0.0
  %1002 = vmatprep.subr.mxu0 0.0
  %1003 = vmatpush2.msra.mxu0 0.0
  %1004 = vmatprep.subr.mxu0 0.0
  %1005 = vmatpush2.msra.mxu0 0.0
  %1006 = vmatprep.subr.mxu0 0.0
  %1007 = vmatpush2.msra.mxu0 0.0
  %1008 = vmatprep.subr.mxu0 0.0
  %1009 = vmatpush2.msra.mxu0 0.0
  %1010 = vmatprep.subr.mxu0 0.0
  %1011 = vmatpush2.msra.mxu0 0.0
  %1012 = vmatprep.subr.mxu0 0.0
  %1013 = vmatpush2.msra.mxu0 0.0
  %1014 = vmatprep.subr.mxu0 0.0
  %1015 = vmatpush2.msra.mxu0 0.0
  %1016 = vmatprep.mubr.f32.mxu0 0.0
  %1017 = vmatmul.mubr.f32.gmra.mxu0 %v950
  %v1018 = vpop.f32.mrf.mxu0
  %v1019 = vadd.f32 0.0, %v1018
  %v1020 = vpop.f32.mrf.mxu0
  %1021 = vdwg.mxu0
  %v1022 = vadd.f32 %v643, %v1019
  %v1023 = vxor.u32 %v1022, 2147483648
  %v1024 = vmul.f32 %v1023, 1.442695
  %v1025 = vpow.pop %v1024
  %v1026 = vadd.f32 %v1025, 1.0
  %v1027 = vrcp.pop %v1026
  %v1028 = vmul.f32 1.0, %v1027
  %v1029 = vtanh.pop %v1022
  %v1030 = vmul.f32 %v1028, %v840
  %1032 = vrot.lane.b32.xlu0 %v1029, 64
  %v1033 = vpop.permute.xlu0 %1032
  %v1035 = vmul.f32 %v1028, %v1033
  %1037 = vrot.lane.b32.xlu0 %v1035, 32
  %v1038 = vpop.permute.xlu0 %1037
  %v1040 = vadd.f32 %v1030, %v1038
  %v1041 = vtanh.pop %v1040
  %1043 = vrot.lane.b32.xlu0 %v1041, 64
  %v1044 = vpop.permute.xlu0 %1043
  %v1046 = vmul.f32 %v1028, %v1044
  %1048 = vrot.lane.b32.xlu0 %v946, 32
  %v1049 = vpop.permute.xlu0 %1048
  %v1050 = vsel %vm35, %v1049, 0
  %1052 = vmatprep.subr.mxu0 0.0
  %1053 = vmatpush1.msra.mxu0 0.0
  %1054 = vmatprep.subr.mxu0 0.0
  %1055 = vmatpush1.msra.mxu0 0.0
  %1056 = vmatprep.subr.mxu0 0.0
  %1057 = vmatpush1.msra.mxu0 0.0
  %1058 = vmatprep.subr.mxu0 0.0
  %1059 = vmatpush1.msra.mxu0 0.0
  %1060 = vmatprep.subr.mxu0 0.0
  %1061 = vmatpush1.msra.mxu0 0.0
  %1062 = vmatprep.subr.mxu0 0.0
  %1063 = vmatpush1.msra.mxu0 0.0
  %1064 = vmatprep.subr.mxu0 0.0
  %1065 = vmatpush1.msra.mxu0 0.0
  %1066 = vmatprep.subr.mxu0 0.0
  %1067 = vmatpush1.msra.mxu0 0.0
  %1068 = vmatprep.subr.mxu0 0.0
  %1069 = vmatpush1.msra.mxu0 0.0
  %1070 = vmatprep.subr.mxu0 0.0
  %1071 = vmatpush1.msra.mxu0 0.0
  %1072 = vmatprep.subr.mxu0 0.0
  %1073 = vmatpush1.msra.mxu0 0.0
  %1074 = vmatprep.subr.mxu0 0.0
  %1075 = vmatpush1.msra.mxu0 0.0
  %1076 = vmatprep.subr.mxu0 0.0
  %1077 = vmatpush1.msra.mxu0 %v25
  %1078 = vmatprep.subr.mxu0 0.0
  %1079 = vmatpush1.msra.mxu0 %v24
  %1080 = vmatprep.subr.mxu0 0.0
  %1081 = vmatpush1.msra.mxu0 %v23
  %1082 = vmatprep.subr.mxu0 0.0
  %1083 = vmatpush1.msra.mxu0 %v22
  %1084 = vmatprep.subr.mxu0 0.0
  %1085 = vmatpush2.msra.mxu0 0.0
  %1086 = vmatprep.subr.mxu0 0.0
  %1087 = vmatpush2.msra.mxu0 0.0
  %1088 = vmatprep.subr.mxu0 0.0
  %1089 = vmatpush2.msra.mxu0 0.0
  %1090 = vmatprep.subr.mxu0 0.0
  %1091 = vmatpush2.msra.mxu0 0.0
  %1092 = vmatprep.subr.mxu0 0.0
  %1093 = vmatpush2.msra.mxu0 0.0
  %1094 = vmatprep.subr.mxu0 0.0
  %1095 = vmatpush2.msra.mxu0 0.0
  %1096 = vmatprep.subr.mxu0 0.0
  %1097 = vmatpush2.msra.mxu0 0.0
  %1098 = vmatprep.subr.mxu0 0.0
  %1099 = vmatpush2.msra.mxu0 0.0
  %1100 = vmatprep.subr.mxu0 0.0
  %1101 = vmatpush2.msra.mxu0 0.0
  %1102 = vmatprep.subr.mxu0 0.0
  %1103 = vmatpush2.msra.mxu0 0.0
  %1104 = vmatprep.subr.mxu0 0.0
  %1105 = vmatpush2.msra.mxu0 0.0
  %1106 = vmatprep.subr.mxu0 0.0
  %1107 = vmatpush2.msra.mxu0 0.0
  %1108 = vmatprep.subr.mxu0 0.0
  %1109 = vmatpush2.msra.mxu0 0.0
  %1110 = vmatprep.subr.mxu0 0.0
  %1111 = vmatpush2.msra.mxu0 0.0
  %1112 = vmatprep.subr.mxu0 0.0
  %1113 = vmatpush2.msra.mxu0 0.0
  %1114 = vmatprep.subr.mxu0 0.0
  %1115 = vmatpush2.msra.mxu0 0.0
  %1116 = vmatprep.mubr.f32.mxu0 0.0
  %1117 = vmatmul.mubr.f32.gmra.mxu0 %v1050
  %v1118 = vpop.f32.mrf.mxu0
  %v1119 = vadd.f32 0.0, %v1118
  %v1120 = vpop.f32.mrf.mxu0
  %1121 = vdwg.mxu0
  %v1122 = vadd.f32 %v439, %v1119
  %v1123 = vxor.u32 %v1122, 2147483648
  %v1124 = vmul.f32 %v1123, 1.442695
  %v1125 = vpow.pop %v1124
  %v1126 = vadd.f32 %v1125, 1.0
  %v1127 = vrcp.pop %v1126
  %v1128 = vmul.f32 1.0, %v1127
  %v1129 = vtanh.pop %v1122
  %v1130 = vmul.f32 %v1128, %v940
  %1132 = vrot.lane.b32.xlu0 %v1129, 64
  %v1133 = vpop.permute.xlu0 %1132
  %v1135 = vmul.f32 %v1128, %v1133
  %1137 = vrot.lane.b32.xlu0 %v1135, 32
  %v1138 = vpop.permute.xlu0 %1137
  %v1140 = vadd.f32 %v1130, %v1138
  %v1141 = vtanh.pop %v1140
  %1143 = vrot.lane.b32.xlu0 %v1141, 64
  %v1144 = vpop.permute.xlu0 %1143
  %v1146 = vmul.f32 %v1128, %v1144
  %1148 = vrot.lane.b32.xlu0 %v1046, 32
  %v1149 = vpop.permute.xlu0 %1148
  %v1150 = vsel %vm35, %v1149, 0
  %1152 = vmatprep.subr.mxu0 0.0
  %1153 = vmatpush1.msra.mxu0 0.0
  %1154 = vmatprep.subr.mxu0 0.0
  %1155 = vmatpush1.msra.mxu0 0.0
  %1156 = vmatprep.subr.mxu0 0.0
  %1157 = vmatpush1.msra.mxu0 0.0
  %1158 = vmatprep.subr.mxu0 0.0
  %1159 = vmatpush1.msra.mxu0 0.0
  %1160 = vmatprep.subr.mxu0 0.0
  %1161 = vmatpush1.msra.mxu0 0.0
  %1162 = vmatprep.subr.mxu0 0.0
  %1163 = vmatpush1.msra.mxu0 0.0
  %1164 = vmatprep.subr.mxu0 0.0
  %1165 = vmatpush1.msra.mxu0 0.0
  %1166 = vmatprep.subr.mxu0 0.0
  %1167 = vmatpush1.msra.mxu0 0.0
  %1168 = vmatprep.subr.mxu0 0.0
  %1169 = vmatpush1.msra.mxu0 0.0
  %1170 = vmatprep.subr.mxu0 0.0
  %1171 = vmatpush1.msra.mxu0 0.0
  %1172 = vmatprep.subr.mxu0 0.0
  %1173 = vmatpush1.msra.mxu0 0.0
  %1174 = vmatprep.subr.mxu0 0.0
  %1175 = vmatpush1.msra.mxu0 0.0
  %1176 = vmatprep.subr.mxu0 0.0
  %1177 = vmatpush1.msra.mxu0 %v29
  %1178 = vmatprep.subr.mxu0 0.0
  %1179 = vmatpush1.msra.mxu0 %v28
  %1180 = vmatprep.subr.mxu0 0.0
  %1181 = vmatpush1.msra.mxu0 %v27
  %1182 = vmatprep.subr.mxu0 0.0
  %1183 = vmatpush1.msra.mxu0 %v26
  %1184 = vmatprep.subr.mxu0 0.0
  %1185 = vmatpush2.msra.mxu0 0.0
  %1186 = vmatprep.subr.mxu0 0.0
  %1187 = vmatpush2.msra.mxu0 0.0
  %1188 = vmatprep.subr.mxu0 0.0
  %1189 = vmatpush2.msra.mxu0 0.0
  %1190 = vmatprep.subr.mxu0 0.0
  %1191 = vmatpush2.msra.mxu0 0.0
  %1192 = vmatprep.subr.mxu0 0.0
  %1193 = vmatpush2.msra.mxu0 0.0
  %1194 = vmatprep.subr.mxu0 0.0
  %1195 = vmatpush2.msra.mxu0 0.0
  %1196 = vmatprep.subr.mxu0 0.0
  %1197 = vmatpush2.msra.mxu0 0.0
  %1198 = vmatprep.subr.mxu0 0.0
  %1199 = vmatpush2.msra.mxu0 0.0
  %1200 = vmatprep.subr.mxu0 0.0
  %1201 = vmatpush2.msra.mxu0 0.0
  %1202 = vmatprep.subr.mxu0 0.0
  %1203 = vmatpush2.msra.mxu0 0.0
  %1204 = vmatprep.subr.mxu0 0.0
  %1205 = vmatpush2.msra.mxu0 0.0
  %1206 = vmatprep.subr.mxu0 0.0
  %1207 = vmatpush2.msra.mxu0 0.0
  %1208 = vmatprep.subr.mxu0 0.0
  %1209 = vmatpush2.msra.mxu0 0.0
  %1210 = vmatprep.subr.mxu0 0.0
  %1211 = vmatpush2.msra.mxu0 0.0
  %1212 = vmatprep.subr.mxu0 0.0
  %1213 = vmatpush2.msra.mxu0 0.0
  %1214 = vmatprep.subr.mxu0 0.0
  %1215 = vmatpush2.msra.mxu0 0.0
  %1216 = vmatprep.mubr.f32.mxu0 0.0
  %1217 = vmatmul.mubr.f32.gmra.mxu0 %v1150
  %v1218 = vpop.f32.mrf.mxu0
  %v1219 = vadd.f32 0.0, %v1218
  %v1220 = vpop.f32.mrf.mxu0
  %1221 = vdwg.mxu0
  %v1222 = vadd.f32 %v437, %v1219
  %v1223 = vxor.u32 %v1222, 2147483648
  %v1224 = vmul.f32 %v1223, 1.442695
  %v1225 = vpow.pop %v1224
  %v1226 = vadd.f32 %v1225, 1.0
  %v1227 = vrcp.pop %v1226
  %v1228 = vmul.f32 1.0, %v1227
  %v1229 = vtanh.pop %v1222
  %v1230 = vmul.f32 %v1228, %v1040
  %1232 = vrot.lane.b32.xlu0 %v1229, 64
  %v1233 = vpop.permute.xlu0 %1232
  %v1235 = vmul.f32 %v1228, %v1233
  %1237 = vrot.lane.b32.xlu0 %v1235, 32
  %v1238 = vpop.permute.xlu0 %1237
  %v1240 = vadd.f32 %v1230, %v1238
  %v1241 = vtanh.pop %v1240
  %1243 = vrot.lane.b32.xlu0 %v1241, 64
  %v1244 = vpop.permute.xlu0 %1243
  %v1246 = vmul.f32 %v1228, %v1244
  %1248 = vrot.lane.b32.xlu0 %v1146, 32
  %v1249 = vpop.permute.xlu0 %1248
  %v1250 = vsel %vm35, %v1249, 0
  %1252 = vmatprep.subr.mxu0 0.0
  %1253 = vmatpush1.msra.mxu0 0.0
  %1254 = vmatprep.subr.mxu0 0.0
  %1255 = vmatpush1.msra.mxu0 0.0
  %1256 = vmatprep.subr.mxu0 0.0
  %1257 = vmatpush1.msra.mxu0 0.0
  %1258 = vmatprep.subr.mxu0 0.0
  %1259 = vmatpush1.msra.mxu0 0.0
  %1260 = vmatprep.subr.mxu0 0.0
  %1261 = vmatpush1.msra.mxu0 0.0
  %1262 = vmatprep.subr.mxu0 0.0
  %1263 = vmatpush1.msra.mxu0 0.0
  %1264 = vmatprep.subr.mxu0 0.0
  %1265 = vmatpush1.msra.mxu0 0.0
  %1266 = vmatprep.subr.mxu0 0.0
  %1267 = vmatpush1.msra.mxu0 0.0
  %1268 = vmatprep.subr.mxu0 0.0
  %1269 = vmatpush1.msra.mxu0 0.0
  %1270 = vmatprep.subr.mxu0 0.0
  %1271 = vmatpush1.msra.mxu0 0.0
  %1272 = vmatprep.subr.mxu0 0.0
  %1273 = vmatpush1.msra.mxu0 0.0
  %1274 = vmatprep.subr.mxu0 0.0
  %1275 = vmatpush1.msra.mxu0 0.0
  %1276 = vmatprep.subr.mxu0 0.0
  %1277 = vmatpush1.msra.mxu0 %v25
  %1278 = vmatprep.subr.mxu0 0.0
  %1279 = vmatpush1.msra.mxu0 %v24
  %1280 = vmatprep.subr.mxu0 0.0
  %1281 = vmatpush1.msra.mxu0 %v23
  %1282 = vmatprep.subr.mxu0 0.0
  %1283 = vmatpush1.msra.mxu0 %v22
  %1284 = vmatprep.subr.mxu0 0.0
  %1285 = vmatpush2.msra.mxu0 0.0
  %1286 = vmatprep.subr.mxu0 0.0
  %1287 = vmatpush2.msra.mxu0 0.0
  %1288 = vmatprep.subr.mxu0 0.0
  %1289 = vmatpush2.msra.mxu0 0.0
  %1290 = vmatprep.subr.mxu0 0.0
  %1291 = vmatpush2.msra.mxu0 0.0
  %1292 = vmatprep.subr.mxu0 0.0
  %1293 = vmatpush2.msra.mxu0 0.0
  %1294 = vmatprep.subr.mxu0 0.0
  %1295 = vmatpush2.msra.mxu0 0.0
  %1296 = vmatprep.subr.mxu0 0.0
  %1297 = vmatpush2.msra.mxu0 0.0
  %1298 = vmatprep.subr.mxu0 0.0
  %1299 = vmatpush2.msra.mxu0 0.0
  %1300 = vmatprep.subr.mxu0 0.0
  %1301 = vmatpush2.msra.mxu0 0.0
  %1302 = vmatprep.subr.mxu0 0.0
  %1303 = vmatpush2.msra.mxu0 0.0
  %1304 = vmatprep.subr.mxu0 0.0
  %1305 = vmatpush2.msra.mxu0 0.0
  %1306 = vmatprep.subr.mxu0 0.0
  %1307 = vmatpush2.msra.mxu0 0.0
  %1308 = vmatprep.subr.mxu0 0.0
  %1309 = vmatpush2.msra.mxu0 0.0
  %1310 = vmatprep.subr.mxu0 0.0
  %1311 = vmatpush2.msra.mxu0 0.0
  %1312 = vmatprep.subr.mxu0 0.0
  %1313 = vmatpush2.msra.mxu0 0.0
  %1314 = vmatprep.subr.mxu0 0.0
  %1315 = vmatpush2.msra.mxu0 0.0
  %1316 = vmatprep.mubr.f32.mxu0 0.0
  %1317 = vmatmul.mubr.f32.gmra.mxu0 %v1250
  %v1318 = vpop.f32.mrf.mxu0
  %v1319 = vadd.f32 0.0, %v1318
  %v1320 = vpop.f32.mrf.mxu0
  %1321 = vdwg.mxu0
  %v1322 = vadd.f32 %v233, %v1319
  %v1323 = vxor.u32 %v1322, 2147483648
  %v1324 = vmul.f32 %v1323, 1.442695
  %v1325 = vpow.pop %v1324
  %v1326 = vadd.f32 %v1325, 1.0
  %v1327 = vrcp.pop %v1326
  %v1328 = vmul.f32 1.0, %v1327
  %v1329 = vtanh.pop %v1322
  %v1330 = vmul.f32 %v1328, %v1140
  %1332 = vrot.lane.b32.xlu0 %v1329, 64
  %v1333 = vpop.permute.xlu0 %1332
  %v1335 = vmul.f32 %v1328, %v1333
  %1337 = vrot.lane.b32.xlu0 %v1335, 32
  %v1338 = vpop.permute.xlu0 %1337
  %v1340 = vadd.f32 %v1330, %v1338
  %v1341 = vtanh.pop %v1340
  %1343 = vrot.lane.b32.xlu0 %v1341, 64
  %v1344 = vpop.permute.xlu0 %1343
  %v1346 = vmul.f32 %v1328, %v1344
  %1348 = vrot.lane.b32.xlu0 %v1246, 32
  %v1349 = vpop.permute.xlu0 %1348
  %v1350 = vsel %vm35, %v1349, 0
  %1352 = vmatprep.subr.mxu0 0.0
  %1353 = vmatpush1.msra.mxu0 0.0
  %1354 = vmatprep.subr.mxu0 0.0
  %1355 = vmatpush1.msra.mxu0 0.0
  %1356 = vmatprep.subr.mxu0 0.0
  %1357 = vmatpush1.msra.mxu0 0.0
  %1358 = vmatprep.subr.mxu0 0.0
  %1359 = vmatpush1.msra.mxu0 0.0
  %1360 = vmatprep.subr.mxu0 0.0
  %1361 = vmatpush1.msra.mxu0 0.0
  %1362 = vmatprep.subr.mxu0 0.0
  %1363 = vmatpush1.msra.mxu0 0.0
  %1364 = vmatprep.subr.mxu0 0.0
  %1365 = vmatpush1.msra.mxu0 0.0
  %1366 = vmatprep.subr.mxu0 0.0
  %1367 = vmatpush1.msra.mxu0 0.0
  %1368 = vmatprep.subr.mxu0 0.0
  %1369 = vmatpush1.msra.mxu0 0.0
  %1370 = vmatprep.subr.mxu0 0.0
  %1371 = vmatpush1.msra.mxu0 0.0
  %1372 = vmatprep.subr.mxu0 0.0
  %1373 = vmatpush1.msra.mxu0 0.0
  %1374 = vmatprep.subr.mxu0 0.0
  %1375 = vmatpush1.msra.mxu0 0.0
  %1376 = vmatprep.subr.mxu0 0.0
  %1377 = vmatpush1.msra.mxu0 %v29
  %1378 = vmatprep.subr.mxu0 0.0
  %1379 = vmatpush1.msra.mxu0 %v28
  %1380 = vmatprep.subr.mxu0 0.0
  %1381 = vmatpush1.msra.mxu0 %v27
  %1382 = vmatprep.subr.mxu0 0.0
  %1383 = vmatpush1.msra.mxu0 %v26
  %1384 = vmatprep.subr.mxu0 0.0
  %1385 = vmatpush2.msra.mxu0 0.0
  %1386 = vmatprep.subr.mxu0 0.0
  %1387 = vmatpush2.msra.mxu0 0.0
  %1388 = vmatprep.subr.mxu0 0.0
  %1389 = vmatpush2.msra.mxu0 0.0
  %1390 = vmatprep.subr.mxu0 0.0
  %1391 = vmatpush2.msra.mxu0 0.0
  %1392 = vmatprep.subr.mxu0 0.0
  %1393 = vmatpush2.msra.mxu0 0.0
  %1394 = vmatprep.subr.mxu0 0.0
  %1395 = vmatpush2.msra.mxu0 0.0
  %1396 = vmatprep.subr.mxu0 0.0
  %1397 = vmatpush2.msra.mxu0 0.0
  %1398 = vmatprep.subr.mxu0 0.0
  %1399 = vmatpush2.msra.mxu0 0.0
  %1400 = vmatprep.subr.mxu0 0.0
  %1401 = vmatpush2.msra.mxu0 0.0
  %1402 = vmatprep.subr.mxu0 0.0
  %1403 = vmatpush2.msra.mxu0 0.0
  %1404 = vmatprep.subr.mxu0 0.0
  %1405 = vmatpush2.msra.mxu0 0.0
  %1406 = vmatprep.subr.mxu0 0.0
  %1407 = vmatpush2.msra.mxu0 0.0
  %1408 = vmatprep.subr.mxu0 0.0
  %1409 = vmatpush2.msra.mxu0 0.0
  %1410 = vmatprep.subr.mxu0 0.0
  %1411 = vmatpush2.msra.mxu0 0.0
  %1412 = vmatprep.subr.mxu0 0.0
  %1413 = vmatpush2.msra.mxu0 0.0
  %1414 = vmatprep.subr.mxu0 0.0
  %1415 = vmatpush2.msra.mxu0 0.0
  %1416 = vmatprep.mubr.f32.mxu0 0.0
  %1417 = vmatmul.mubr.f32.gmra.mxu0 %v1350
  %v1418 = vpop.f32.mrf.mxu0
  %v1419 = vadd.f32 0.0, %v1418
  %v1420 = vpop.f32.mrf.mxu0
  %1421 = vdwg.mxu0
  %v1422 = vadd.f32 %v231, %v1419
  %v1423 = vxor.u32 %v1422, 2147483648
  %v1424 = vmul.f32 %v1423, 1.442695
  %v1425 = vpow.pop %v1424
  %v1426 = vadd.f32 %v1425, 1.0
  %v1427 = vrcp.pop %v1426
  %v1428 = vmul.f32 1.0, %v1427
  %v1429 = vtanh.pop %v1422
  %v1430 = vmul.f32 %v1428, %v1240
  %1432 = vrot.lane.b32.xlu0 %v1429, 64
  %v1433 = vpop.permute.xlu0 %1432
  %v1435 = vmul.f32 %v1428, %v1433
  %1437 = vrot.lane.b32.xlu0 %v1435, 32
  %v1438 = vpop.permute.xlu0 %1437
  %v1440 = vadd.f32 %v1430, %v1438
  %v1441 = vtanh.pop %v1440
  %1443 = vrot.lane.b32.xlu0 %v1441, 64
  %v1444 = vpop.permute.xlu0 %1443
  %v1446 = vmul.f32 %v1428, %v1444
  %1448 = vrot.lane.b32.xlu0 %v1346, 32
  %v1449 = vpop.permute.xlu0 %1448
  %v1450 = vsel %vm35, %v1449, 0
  %1452 = vmatprep.subr.mxu0 0.0
  %1453 = vmatpush1.msra.mxu0 0.0
  %1454 = vmatprep.subr.mxu0 0.0
  %1455 = vmatpush1.msra.mxu0 0.0
  %1456 = vmatprep.subr.mxu0 0.0
  %1457 = vmatpush1.msra.mxu0 0.0
  %1458 = vmatprep.subr.mxu0 0.0
  %1459 = vmatpush1.msra.mxu0 0.0
  %1460 = vmatprep.subr.mxu0 0.0
  %1461 = vmatpush1.msra.mxu0 0.0
  %1462 = vmatprep.subr.mxu0 0.0
  %1463 = vmatpush1.msra.mxu0 0.0
  %1464 = vmatprep.subr.mxu0 0.0
  %1465 = vmatpush1.msra.mxu0 0.0
  %1466 = vmatprep.subr.mxu0 0.0
  %1467 = vmatpush1.msra.mxu0 0.0
  %1468 = vmatprep.subr.mxu0 0.0
  %1469 = vmatpush1.msra.mxu0 0.0
  %1470 = vmatprep.subr.mxu0 0.0
  %1471 = vmatpush1.msra.mxu0 0.0
  %1472 = vmatprep.subr.mxu0 0.0
  %1473 = vmatpush1.msra.mxu0 0.0
  %1474 = vmatprep.subr.mxu0 0.0
  %1475 = vmatpush1.msra.mxu0 0.0
  %1476 = vmatprep.subr.mxu0 0.0
  %1477 = vmatpush1.msra.mxu0 %v25
  %1478 = vmatprep.subr.mxu0 0.0
  %1479 = vmatpush1.msra.mxu0 %v24
  %1480 = vmatprep.subr.mxu0 0.0
  %1481 = vmatpush1.msra.mxu0 %v23
  %1482 = vmatprep.subr.mxu0 0.0
  %1483 = vmatpush1.msra.mxu0 %v22
  %1484 = vmatprep.subr.mxu0 0.0
  %1485 = vmatpush2.msra.mxu0 0.0
  %1486 = vmatprep.subr.mxu0 0.0
  %1487 = vmatpush2.msra.mxu0 0.0
  %1488 = vmatprep.subr.mxu0 0.0
  %1489 = vmatpush2.msra.mxu0 0.0
  %1490 = vmatprep.subr.mxu0 0.0
  %1491 = vmatpush2.msra.mxu0 0.0
  %1492 = vmatprep.subr.mxu0 0.0
  %1493 = vmatpush2.msra.mxu0 0.0
  %1494 = vmatprep.subr.mxu0 0.0
  %1495 = vmatpush2.msra.mxu0 0.0
  %1496 = vmatprep.subr.mxu0 0.0
  %1497 = vmatpush2.msra.mxu0 0.0
  %1498 = vmatprep.subr.mxu0 0.0
  %1499 = vmatpush2.msra.mxu0 0.0
  %1500 = vmatprep.subr.mxu0 0.0
  %1501 = vmatpush2.msra.mxu0 0.0
  %1502 = vmatprep.subr.mxu0 0.0
  %1503 = vmatpush2.msra.mxu0 0.0
  %1504 = vmatprep.subr.mxu0 0.0
  %1505 = vmatpush2.msra.mxu0 0.0
  %1506 = vmatprep.subr.mxu0 0.0
  %1507 = vmatpush2.msra.mxu0 0.0
  %1508 = vmatprep.subr.mxu0 0.0
  %1509 = vmatpush2.msra.mxu0 0.0
  %1510 = vmatprep.subr.mxu0 0.0
  %1511 = vmatpush2.msra.mxu0 0.0
  %1512 = vmatprep.subr.mxu0 0.0
  %1513 = vmatpush2.msra.mxu0 0.0
  %1514 = vmatprep.subr.mxu0 0.0
  %1515 = vmatpush2.msra.mxu0 0.0
  %1516 = vmatprep.mubr.f32.mxu0 0.0
  %1517 = vmatmul.mubr.f32.gmra.mxu0 %v1450
  %v1518 = vpop.f32.mrf.mxu0
  %v1519 = vadd.f32 0.0, %v1518
  %v1520 = vpop.f32.mrf.mxu0
  %1521 = vdwg.mxu0
  %v1522 = vadd.f32 %v33, %v1519
  %v1523 = vxor.u32 %v1522, 2147483648
  %v1524 = vmul.f32 %v1523, 1.442695
  %v1525 = vpow.pop %v1524
  %v1526 = vadd.f32 %v1525, 1.0
  %v1527 = vrcp.pop %v1526
  %v1528 = vmul.f32 1.0, %v1527
  %v1529 = vtanh.pop %v1522
  %v1530 = vmul.f32 %v1528, %v1340
  %1532 = vrot.lane.b32.xlu0 %v1529, 64
  %v1533 = vpop.permute.xlu0 %1532
  %v1535 = vmul.f32 %v1528, %v1533
  %1537 = vrot.lane.b32.xlu0 %v1535, 32
  %v1538 = vpop.permute.xlu0 %1537
  %v1540 = vadd.f32 %v1530, %v1538
  %v1541 = vtanh.pop %v1540
  %1543 = vrot.lane.b32.xlu0 %v1541, 64
  %v1544 = vpop.permute.xlu0 %1543
  %v1546 = vmul.f32 %v1528, %v1544
  %1548 = vrot.lane.b32.xlu0 %v1446, 32
  %v1549 = vpop.permute.xlu0 %1548
  %v1550 = vsel %vm35, %v1549, 0
  %1552 = vmatprep.subr.mxu0 0.0
  %1553 = vmatpush1.msra.mxu0 0.0
  %1554 = vmatprep.subr.mxu0 0.0
  %1555 = vmatpush1.msra.mxu0 0.0
  %1556 = vmatprep.subr.mxu0 0.0
  %1557 = vmatpush1.msra.mxu0 0.0
  %1558 = vmatprep.subr.mxu0 0.0
  %1559 = vmatpush1.msra.mxu0 0.0
  %1560 = vmatprep.subr.mxu0 0.0
  %1561 = vmatpush1.msra.mxu0 0.0
  %1562 = vmatprep.subr.mxu0 0.0
  %1563 = vmatpush1.msra.mxu0 0.0
  %1564 = vmatprep.subr.mxu0 0.0
  %1565 = vmatpush1.msra.mxu0 0.0
  %1566 = vmatprep.subr.mxu0 0.0
  %1567 = vmatpush1.msra.mxu0 0.0
  %1568 = vmatprep.subr.mxu0 0.0
  %1569 = vmatpush1.msra.mxu0 0.0
  %1570 = vmatprep.subr.mxu0 0.0
  %1571 = vmatpush1.msra.mxu0 0.0
  %1572 = vmatprep.subr.mxu0 0.0
  %1573 = vmatpush1.msra.mxu0 0.0
  %1574 = vmatprep.subr.mxu0 0.0
  %1575 = vmatpush1.msra.mxu0 0.0
  %1576 = vmatprep.subr.mxu0 0.0
  %1577 = vmatpush1.msra.mxu0 %v29
  %1578 = vmatprep.subr.mxu0 0.0
  %1579 = vmatpush1.msra.mxu0 %v28
  %1580 = vmatprep.subr.mxu0 0.0
  %1581 = vmatpush1.msra.mxu0 %v27
  %1582 = vmatprep.subr.mxu0 0.0
  %1583 = vmatpush1.msra.mxu0 %v26
  %1584 = vmatprep.subr.mxu0 0.0
  %1585 = vmatpush2.msra.mxu0 0.0
  %1586 = vmatprep.subr.mxu0 0.0
  %1587 = vmatpush2.msra.mxu0 0.0
  %1588 = vmatprep.subr.mxu0 0.0
  %1589 = vmatpush2.msra.mxu0 0.0
  %1590 = vmatprep.subr.mxu0 0.0
  %1591 = vmatpush2.msra.mxu0 0.0
  %1592 = vmatprep.subr.mxu0 0.0
  %1593 = vmatpush2.msra.mxu0 0.0
  %1594 = vmatprep.subr.mxu0 0.0
  %1595 = vmatpush2.msra.mxu0 0.0
  %1596 = vmatprep.subr.mxu0 0.0
  %1597 = vmatpush2.msra.mxu0 0.0
  %1598 = vmatprep.subr.mxu0 0.0
  %1599 = vmatpush2.msra.mxu0 0.0
  %1600 = vmatprep.subr.mxu0 0.0
  %1601 = vmatpush2.msra.mxu0 0.0
  %1602 = vmatprep.subr.mxu0 0.0
  %1603 = vmatpush2.msra.mxu0 0.0
  %1604 = vmatprep.subr.mxu0 0.0
  %1605 = vmatpush2.msra.mxu0 0.0
  %1606 = vmatprep.subr.mxu0 0.0
  %1607 = vmatpush2.msra.mxu0 0.0
  %1608 = vmatprep.subr.mxu0 0.0
  %1609 = vmatpush2.msra.mxu0 0.0
  %1610 = vmatprep.subr.mxu0 0.0
  %1611 = vmatpush2.msra.mxu0 0.0
  %1612 = vmatprep.subr.mxu0 0.0
  %1613 = vmatpush2.msra.mxu0 0.0
  %1614 = vmatprep.subr.mxu0 0.0
  %1615 = vmatpush2.msra.mxu0 0.0
  %1616 = vmatprep.mubr.f32.mxu0 0.0
  %1617 = vmatmul.mubr.f32.gmra.mxu0 %v1550
  %v1618 = vpop.f32.mrf.mxu0
  %v1619 = vadd.f32 0.0, %v1618
  %v1620 = vpop.f32.mrf.mxu0
  %1621 = vdwg.mxu0
  %v1622 = vadd.f32 %v31, %v1619
  %v1623 = vxor.u32 %v1622, 2147483648
  %v1624 = vmul.f32 %v1623, 1.442695
  %v1625 = vpow.pop %v1624
  %v1626 = vadd.f32 %v1625, 1.0
  %v1627 = vrcp.pop %v1626
  %v1628 = vmul.f32 1.0, %v1627
  %v1629 = vtanh.pop %v1622
  %v1630 = vmul.f32 %v1628, %v1440
  %1632 = vrot.lane.b32.xlu0 %v1629, 64
  %v1633 = vpop.permute.xlu0 %1632
  %v1635 = vmul.f32 %v1628, %v1633
  %1637 = vrot.lane.b32.xlu0 %v1635, 32
  %v1638 = vpop.permute.xlu0 %1637
  %v1640 = vadd.f32 %v1630, %v1638
  %v1641 = vtanh.pop %v1640
  %1643 = vrot.lane.b32.xlu0 %v1641, 64
  %v1644 = vpop.permute.xlu0 %1643
  %v1646 = vmul.f32 %v1628, %v1644
  %1648 = vrot.lane.b32.xlu0 %v1546, 32
  %v1649 = vpop.permute.xlu0 %1648
  %1652 = vrot.lane.b32.xlu0 %v1646, 64
  %v1653 = vpop.permute.xlu0 %1652
  %v1655 = vsel %vm35, %v1649, %v1653
  %v1656 = vld [vmem:[%s3] sm:$0xff]
  %v1657 = vld [vmem:[%s3 + $0x8] sm:$0xff]
  %v1658 = vld [vmem:[%s3 + $0x10] sm:$0xff]
  %v1659 = vld [vmem:[%s3 + $0x18] sm:$0xff]
  %v1660 = vld [vmem:[%s3 + $0x20] sm:$0xff]
  %v1661 = vld [vmem:[%s3 + $0x28] sm:$0xff]
  %v1662 = vld [vmem:[%s3 + $0x30] sm:$0xff]
  %v1663 = vld [vmem:[%s3 + $0x38] sm:$0xff]
  %v1664 = vld [vmem:[#allocation2] sm:$0x1]
  %v1666 = vlaneseq
  %v1667 = vshrl.u32 %v1666, 7
  %v1668 = vsub.s32 0, %v1667
  %v1669 = vrot.slane %v1664, %v1668
  %vm1671 = vcmask 523264
  %v1673 = vsel %vm1671, %v1655, 0
  %1675 = vmatprep.subr.mxu0 0.0
  %1676 = vmatpush1.msra.mxu0 0.0
  %1677 = vmatprep.subr.mxu0 0.0
  %1678 = vmatpush1.msra.mxu0 0.0
  %1679 = vmatprep.subr.mxu0 0.0
  %1680 = vmatpush1.msra.mxu0 0.0
  %1681 = vmatprep.subr.mxu0 0.0
  %1682 = vmatpush1.msra.mxu0 0.0
  %1683 = vmatprep.subr.mxu0 0.0
  %1684 = vmatpush1.msra.mxu0 0.0
  %1685 = vmatprep.subr.mxu0 0.0
  %1686 = vmatpush1.msra.mxu0 0.0
  %1687 = vmatprep.subr.mxu0 0.0
  %1688 = vmatpush1.msra.mxu0 0.0
  %1689 = vmatprep.subr.mxu0 0.0
  %1690 = vmatpush1.msra.mxu0 0.0
  %1691 = vmatprep.subr.mxu0 0.0
  %1692 = vmatpush1.msra.mxu0 %v1663
  %1693 = vmatprep.subr.mxu0 0.0
  %1694 = vmatpush1.msra.mxu0 %v1662
  %1695 = vmatprep.subr.mxu0 0.0
  %1696 = vmatpush1.msra.mxu0 %v1661
  %1697 = vmatprep.subr.mxu0 0.0
  %1698 = vmatpush1.msra.mxu0 %v1660
  %1699 = vmatprep.subr.mxu0 0.0
  %1700 = vmatpush1.msra.mxu0 %v1659
  %1701 = vmatprep.subr.mxu0 0.0
  %1702 = vmatpush1.msra.mxu0 %v1658
  %1703 = vmatprep.subr.mxu0 0.0
  %1704 = vmatpush1.msra.mxu0 %v1657
  %1705 = vmatprep.subr.mxu0 0.0
  %1706 = vmatpush1.msra.mxu0 %v1656
  %1707 = vmatprep.subr.mxu0 0.0
  %1708 = vmatpush2.msra.mxu0 0.0
  %1709 = vmatprep.subr.mxu0 0.0
  %1710 = vmatpush2.msra.mxu0 0.0
  %1711 = vmatprep.subr.mxu0 0.0
  %1712 = vmatpush2.msra.mxu0 0.0
  %1713 = vmatprep.subr.mxu0 0.0
  %1714 = vmatpush2.msra.mxu0 0.0
  %1715 = vmatprep.subr.mxu0 0.0
  %1716 = vmatpush2.msra.mxu0 0.0
  %1717 = vmatprep.subr.mxu0 0.0
  %1718 = vmatpush2.msra.mxu0 0.0
  %1719 = vmatprep.subr.mxu0 0.0
  %1720 = vmatpush2.msra.mxu0 0.0
  %1721 = vmatprep.subr.mxu0 0.0
  %1722 = vmatpush2.msra.mxu0 0.0
  %1723 = vmatprep.subr.mxu0 0.0
  %1724 = vmatpush2.msra.mxu0 0.0
  %1725 = vmatprep.subr.mxu0 0.0
  %1726 = vmatpush2.msra.mxu0 0.0
  %1727 = vmatprep.subr.mxu0 0.0
  %1728 = vmatpush2.msra.mxu0 0.0
  %1729 = vmatprep.subr.mxu0 0.0
  %1730 = vmatpush2.msra.mxu0 0.0
  %1731 = vmatprep.subr.mxu0 0.0
  %1732 = vmatpush2.msra.mxu0 0.0
  %1733 = vmatprep.subr.mxu0 0.0
  %1734 = vmatpush2.msra.mxu0 0.0
  %1735 = vmatprep.subr.mxu0 0.0
  %1736 = vmatpush2.msra.mxu0 0.0
  %1737 = vmatprep.subr.mxu0 0.0
  %1738 = vmatpush2.msra.mxu0 0.0
  %1739 = vmatprep.mubr.f32.mxu0 0.0
  %1740 = vmatmul.mubr.f32.gmra.mxu0 %v1673
  %v1741 = vpop.f32.mrf.mxu0
  %v1742 = vadd.f32 %v1669, %v1741
  %v1743 = vpop.f32.mrf.mxu0
  %1744 = vdwg.mxu0
  %vm1745 = vcmask 7168
  %1746 = vst.msk [vmem:[%s5] sm:$0xff] %vm1745, %v1742
  // Predicated region
  $region22: #{message_history_rnn_forward.1} parent=0 // pred_check
    _
  $region23: #{message_history_rnn_forward.1} parent=0 // pred_check_branch
    %1748 = sbr.rel (0) target = $region25
  $region24: #{message_history_rnn_forward.1} parent=0 // pred_region
    _
  $region25: #{message_history_rnn_forward.1} parent=0 // pred_fallthru
    _
  // Predicated region
  $region26: #{message_history_rnn_forward.1} parent=0 // pred_check
    _
  $region27: #{message_history_rnn_forward.1} parent=0 // pred_check_branch
    %1750 = sbr.rel (0) target = $region29
  $region28: #{message_history_rnn_forward.1} parent=0 // pred_region
    _
  $region29: #{message_history_rnn_forward.1} parent=0 // pred_fallthru
    _

</llo_original>
